<compile_context>
chip_gen: v6e
topology: v6e:2x2x1
jax: 0.10.0
libtpu: 0.0.40
codegen_flags: <defaults>
</compile_context>

<pallas_src>
import math

import jax
import jax.numpy as jnp
from jax.experimental import pallas as pl
from jax.experimental.pallas import tpu as pltpu

# ---------------- model hyper-parameters (small, consistent with module) ----
B, S, D = 2, 8, 32          # batch, seq, d_model
H = 4                       # attn_heads
DK = D // H                 # per-head dim
DFF = 64                    # d_ffn
N = B * S
LN_EPS = 1e-5
PROW = 128                  # packed-parameter row width (one lane tile)


def _layernorm(x, gamma, beta):
    mu = jnp.mean(x, axis=-1, keepdims=True)
    var = jnp.mean((x - mu) ** 2, axis=-1, keepdims=True)
    return (x - mu) * jax.lax.rsqrt(var + LN_EPS) * gamma + beta


def _erf_poly(x):
    # Abramowitz-Stegun 7.1.26, max abs error 1.5e-7; VPU/EUP only ops.
    ax = jnp.abs(x)
    t = 1.0 / (1.0 + 0.3275911 * ax)
    poly = t * (0.254829592 + t * (-0.284496736 + t * (1.421413741
             + t * (-1.453152027 + t * 1.061405429))))
    y = 1.0 - poly * jnp.exp(-ax * ax)
    return jnp.where(x >= 0.0, y, -y)


def _gelu_exact(x):
    return 0.5 * x * (1.0 + _erf_poly(x * (1.0 / math.sqrt(2.0))))


def transformer_block_kernel(x_ref, mask_ref, wa_ref, wb_ref, pv_ref, o_ref):
    x = x_ref[...]                         # (S, D) f32 rows of batch b
    neg = mask_ref[...] == 0.0             # (S, S) bool -> masked positions

    # packed small parameters: one (8,128) tile, static row/lane slices
    bqkv = pv_ref[0:1, :3 * D]             # (1, 3D)  (bq pre-scaled by 1/sqrt(dk))
    bo   = pv_ref[1:2, :D]
    b1   = pv_ref[2:3, :DFF]
    b2   = pv_ref[3:4, :D]
    g1   = pv_ref[4:5, :D]
    be1  = pv_ref[5:6, :D]
    g2   = pv_ref[6:7, :D]
    be2  = pv_ref[7:8, :D]

    # packed bf16 weight slabs (lane-dense (32,128) tiles)
    wqkv = wa_ref[:, :3 * D]               # (D, 3D)  bf16, Q cols pre-scaled
    wo   = wa_ref[:, 3 * D:]               # (D, D)   bf16
    w1   = wb_ref[:, :DFF]                 # (D, DFF) bf16
    w2t  = wb_ref[:, DFF:]                 # (D, DFF) bf16  == W2^T

    # ---- fused QKV projection: one MXU pass, bf16 operands, f32 accumulation
    qkv = jnp.dot(x.astype(jnp.bfloat16), wqkv,
                  preferred_element_type=jnp.float32) + bqkv          # (S, 3D)
    q = qkv[:, :D].astype(jnp.bfloat16)
    k = qkv[:, D:2 * D].astype(jnp.bfloat16)
    v = qkv[:, 2 * D:].astype(jnp.bfloat16)

    # ---- multi-head self-attention (static unroll over H=4 heads) ----------
    ctx = []
    for h in range(H):
        sl = slice(h * DK, (h + 1) * DK)
        s = jax.lax.dot_general(q[:, sl], k[:, sl], (((1,), (1,)), ((), ())),
                                preferred_element_type=jnp.float32)   # (S, S)
        s = jnp.where(neg, -1e9, s)        # exact masked_fill(mask==0, -1e9)
        s = s - jnp.max(s, axis=-1, keepdims=True)
        p = jnp.exp(s)
        p = p * pl.reciprocal(jnp.sum(p, axis=-1, keepdims=True), approx=True)
        ctx.append(jnp.dot(p.astype(jnp.bfloat16), v[:, sl],
                           preferred_element_type=jnp.float32))       # (S, DK)
    ctx = jnp.concatenate(ctx, axis=-1)                               # (S, D)

    # single merged output projection (no per-head K=8 matmuls)
    attn = jnp.dot(ctx.astype(jnp.bfloat16), wo,
                   preferred_element_type=jnp.float32) + bo

    # ---- sublayer connection 1 (residual + LayerNorm) -----------------------
    y = _layernorm(x + attn, g1, be1)

    # ---- point-wise feed-forward --------------------------------------------
    h1 = _gelu_exact(jnp.dot(y.astype(jnp.bfloat16), w1,
                             preferred_element_type=jnp.float32) + b1)
    ff = jax.lax.dot_general(h1.astype(jnp.bfloat16), w2t,
                             (((1,), (1,)), ((), ())),
                             preferred_element_type=jnp.float32) + b2

    # ---- sublayer connection 2 ----------------------------------------------
    o_ref[...] = _layernorm(y + ff, g2, be2).astype(o_ref.dtype)


def transformer_block(x, mask, params):
    """x: (B, S, D) f32, mask: (B, S, S) (nonzero = keep, 0 = masked)."""
    (wq, bq, wk, bk, wv, bv, wo, bo, w1, b1, w2, b2, g1, be1, g2, be2) = params

    # --- wrapper-side layout work (one-time, outside the kernel) -------------
    x2d = x.reshape(N, D).astype(jnp.float32)
    mask2d = mask.reshape(N, S).astype(jnp.float32)      # (B*S, S) per-batch mask rows

    inv = 1.0 / math.sqrt(DK)
    wqkv = jnp.concatenate([wq * inv, wk, wv], axis=1)               # (D, 3D)
    slab_a = jnp.concatenate([wqkv, wo], axis=1).astype(jnp.bfloat16)   # (32, 128)
    slab_b = jnp.concatenate([w1, w2.T], axis=1).astype(jnp.bfloat16)   # (32, 128)

    def row(*vs):
        vec = jnp.concatenate([jnp.asarray(t, jnp.float32).reshape(-1)
                               for t in vs])
        return jnp.pad(vec, (0, PROW - vec.shape[0]))

    pvec = jnp.stack([row(bq * inv, bk, bv), row(bo), row(b1), row(b2),
                      row(g1), row(be1), row(g2), row(be2)])         # (8, 128)

    out2d = pl.pallas_call(
        transformer_block_kernel,
        out_shape=jax.ShapeDtypeStruct((N, D), jnp.float32),
        grid=(B,),                                  # batch split; parallel for v7x megacore
        in_specs=[
            pl.BlockSpec((S, D), lambda b: (b, 0)),          # x rows of batch b
            pl.BlockSpec((S, S), lambda b: (b, 0)),          # mask rows of batch b
            pl.BlockSpec((D, 4 * D), lambda b: (0, 0)),      # [Wqkv | Wo] slab (resident)
            pl.BlockSpec((D, 2 * DFF), lambda b: (0, 0)),    # [W1 | W2^T] slab (resident)
            pl.BlockSpec((8, PROW), lambda b: (0, 0)),       # packed biases / LN params
        ],
        out_specs=pl.BlockSpec((S, D), lambda b: (b, 0)),
        compiler_params=pltpu.CompilerParams(dimension_semantics=("parallel",)),
    )(x2d, mask2d, slab_a, slab_b, pvec)

    return out2d.reshape(B, S, D)


# ---------------- pure-JAX reference (matches the torch module) -------------
def reference(x, mask, params):
    (wq, bq, wk, bk, wv, bv, wo, bo, w1, b1, w2, b2, g1, be1, g2, be2) = params
    q = x @ wq + bq
    k = x @ wk + bk
    v = x @ wv + bv

    def split(t):
        return t.reshape(B, S, H, DK).transpose(0, 2, 1, 3)

    qh, kh, vh = split(q), split(k), split(v)
    scores = jnp.einsum("bhqd,bhkd->bhqk", qh, kh) / math.sqrt(DK)
    scores = jnp.where(mask[:, None, :, :] == 0, -1e9, scores)
    p = jax.nn.softmax(scores, axis=-1)
    attn = jnp.einsum("bhqk,bhkd->bhqd", p, vh)
    attn = attn.transpose(0, 2, 1, 3).reshape(B, S, D)
    attn = attn @ wo + bo
    y = _layernorm(x + attn, g1, be1)
    gelu = lambda t: 0.5 * t * (1.0 + jax.lax.erf(t / math.sqrt(2.0)))
    ff = gelu(y @ w1 + b1) @ w2 + b2
    return _layernorm(y + ff, g2, be2)


if __name__ == "__main__":
    key = jax.random.PRNGKey(0)
    ks = jax.random.split(key, 16)

    def w(k, shape, scale=0.05):
        return (scale * jax.random.normal(k, shape)).astype(jnp.float32)

    params = (
        w(ks[0], (D, D)),    w(ks[1], (1, D), 0.01),    # q
        w(ks[2], (D, D)),    w(ks[3], (1, D), 0.01),    # k
        w(ks[4], (D, D)),    w(ks[5], (1, D), 0.01),    # v
        w(ks[6], (D, D)),    w(ks[7], (1, D), 0.01),    # out proj
        w(ks[8], (D, DFF)),  w(ks[9], (1, DFF), 0.01),  # ffn linear1
        w(ks[10], (DFF, D)), w(ks[11], (1, D), 0.01),   # ffn linear2
        jnp.ones((1, D), jnp.float32), jnp.zeros((1, D), jnp.float32),  # ln1
        jnp.ones((1, D), jnp.float32), jnp.zeros((1, D), jnp.float32),  # ln2
    )

    x = jax.random.normal(ks[12], (B, S, D), dtype=jnp.float32)
    # causal mask, 1 = attend, 0 = masked
    causal = jnp.tril(jnp.ones((S, S), jnp.float32))
    mask = jnp.broadcast_to(causal, (B, S, S))

    out = transformer_block(x, mask, params)
    out = jax.block_until_ready(out)

    ref = reference(x, mask, params)
    assert out.shape == (B, S, D)
    assert jnp.allclose(out, ref, atol=2e-2, rtol=2e-2), (
        float(jnp.max(jnp.abs(out - ref))))

    print("KERNEL_OK")
</pallas_src>

<mosaic_0001>
module attributes {stable_mosaic.version = 11 : i64} {
  func.func @transformer_block_kernel(%arg0: i32, %arg1: memref<8x32xf32, #tpu.memory_space<vmem>>, %arg2: memref<8x8xf32, #tpu.memory_space<vmem>>, %arg3: memref<32x128xbf16, #tpu.memory_space<vmem>>, %arg4: memref<32x128xbf16, #tpu.memory_space<vmem>>, %arg5: memref<8x128xf32, #tpu.memory_space<vmem>>, %arg6: memref<8x32xf32, #tpu.memory_space<vmem>>) attributes {dimension_semantics = [#tpu.dimension_semantics<parallel>], iteration_bounds = array<i64: 2>, scalar_prefetch = 0 : i64, scratch_operands = 0 : i64, tpu.core_type = #tpu.core_type<tc>, window_params = [{transform_indices = @transform_0, window_bounds = array<i64: 8, 32>}, {transform_indices = @transform_1, window_bounds = array<i64: 8, 8>}, {pipeline_mode = #tpu.pipeline_mode<synchronous>, transform_indices = @transform_2, window_bounds = array<i64: 32, 128>}, {pipeline_mode = #tpu.pipeline_mode<synchronous>, transform_indices = @transform_3, window_bounds = array<i64: 32, 128>}, {pipeline_mode = #tpu.pipeline_mode<synchronous>, transform_indices = @transform_4, window_bounds = array<i64: 8, 128>}, {transform_indices = @transform_5, window_bounds = array<i64: 8, 32>}]} {
    %c0 = arith.constant 0 : index
    %c0_0 = arith.constant 0 : index
    %0 = vector.load %arg1[%c0, %c0_0] : memref<8x32xf32, #tpu.memory_space<vmem>>, vector<8x32xf32>
    %c0_1 = arith.constant 0 : index
    %c0_2 = arith.constant 0 : index
    %1 = vector.load %arg2[%c0_1, %c0_2] : memref<8x8xf32, #tpu.memory_space<vmem>>, vector<8x8xf32>
    %cst = arith.constant 0.000000e+00 : f32
    %2 = vector.broadcast %cst : f32 to vector<8x8xf32>
    %3 = arith.cmpf oeq, %1, %2 : vector<8x8xf32>
    %c0_3 = arith.constant 0 : index
    %c0_4 = arith.constant 0 : index
    %4 = vector.load %arg5[%c0_3, %c0_4] : memref<8x128xf32, #tpu.memory_space<vmem>>, vector<1x96xf32>
    %c1 = arith.constant 1 : index
    %c0_5 = arith.constant 0 : index
    %5 = vector.load %arg5[%c1, %c0_5] : memref<8x128xf32, #tpu.memory_space<vmem>>, vector<1x32xf32>
    %c2 = arith.constant 2 : index
    %c0_6 = arith.constant 0 : index
    %6 = vector.load %arg5[%c2, %c0_6] : memref<8x128xf32, #tpu.memory_space<vmem>>, vector<1x64xf32>
    %c3 = arith.constant 3 : index
    %c0_7 = arith.constant 0 : index
    %7 = vector.load %arg5[%c3, %c0_7] : memref<8x128xf32, #tpu.memory_space<vmem>>, vector<1x32xf32>
    %c4 = arith.constant 4 : index
    %c0_8 = arith.constant 0 : index
    %8 = vector.load %arg5[%c4, %c0_8] : memref<8x128xf32, #tpu.memory_space<vmem>>, vector<1x32xf32>
    %c5 = arith.constant 5 : index
    %c0_9 = arith.constant 0 : index
    %9 = vector.load %arg5[%c5, %c0_9] : memref<8x128xf32, #tpu.memory_space<vmem>>, vector<1x32xf32>
    %c6 = arith.constant 6 : index
    %c0_10 = arith.constant 0 : index
    %10 = vector.load %arg5[%c6, %c0_10] : memref<8x128xf32, #tpu.memory_space<vmem>>, vector<1x32xf32>
    %c7 = arith.constant 7 : index
    %c0_11 = arith.constant 0 : index
    %11 = vector.load %arg5[%c7, %c0_11] : memref<8x128xf32, #tpu.memory_space<vmem>>, vector<1x32xf32>
    %c0_12 = arith.constant 0 : index
    %c0_13 = arith.constant 0 : index
    %12 = vector.load %arg3[%c0_12, %c0_13] : memref<32x128xbf16, #tpu.memory_space<vmem>>, vector<32x96xbf16>
    %c0_14 = arith.constant 0 : index
    %c96 = arith.constant 96 : index
    %13 = vector.load %arg3[%c0_14, %c96] : memref<32x128xbf16, #tpu.memory_space<vmem>>, vector<32x32xbf16>
    %c0_15 = arith.constant 0 : index
    %c0_16 = arith.constant 0 : index
    %14 = vector.load %arg4[%c0_15, %c0_16] : memref<32x128xbf16, #tpu.memory_space<vmem>>, vector<32x64xbf16>
    %c0_17 = arith.constant 0 : index
    %c64 = arith.constant 64 : index
    %15 = vector.load %arg4[%c0_17, %c64] : memref<32x128xbf16, #tpu.memory_space<vmem>>, vector<32x64xbf16>
    %16 = arith.truncf %0 : vector<8x32xf32> to vector<8x32xbf16>
    %cst_18 = arith.constant dense<0.000000e+00> : vector<8x96xf32>
    %17 = tpu.matmul %16, %12, %cst_18 {dimension_numbers = #tpu.dot_dimension_numbers<[1], [0], [0], [1], [0, 0, 1, 1], [], []>} : vector<8x32xbf16>, vector<32x96xbf16>, vector<8x96xf32> -> vector<8x96xf32>
    %18 = vector.broadcast %4 : vector<1x96xf32> to vector<8x96xf32>
    %19 = arith.addf %17, %18 : vector<8x96xf32>
    %20 = vector.extract_strided_slice %19 {offsets = [0, 0], sizes = [8, 32], strides = [1, 1]} : vector<8x96xf32> to vector<8x32xf32>
    %21 = arith.truncf %20 : vector<8x32xf32> to vector<8x32xbf16>
    %22 = vector.extract_strided_slice %19 {offsets = [0, 32], sizes = [8, 32], strides = [1, 1]} : vector<8x96xf32> to vector<8x32xf32>
    %23 = arith.truncf %22 : vector<8x32xf32> to vector<8x32xbf16>
    %24 = vector.extract_strided_slice %19 {offsets = [0, 64], sizes = [8, 32], strides = [1, 1]} : vector<8x96xf32> to vector<8x32xf32>
    %25 = arith.truncf %24 : vector<8x32xf32> to vector<8x32xbf16>
    %26 = vector.extract_strided_slice %21 {offsets = [0, 0], sizes = [8, 8], strides = [1, 1]} : vector<8x32xbf16> to vector<8x8xbf16>
    %27 = vector.extract_strided_slice %23 {offsets = [0, 0], sizes = [8, 8], strides = [1, 1]} : vector<8x32xbf16> to vector<8x8xbf16>
    %cst_19 = arith.constant dense<0.000000e+00> : vector<8x8xf32>
    %28 = tpu.matmul %26, %27, %cst_19 {dimension_numbers = #tpu.dot_dimension_numbers<[1], [1], [0], [0], [0, 0, 1, 0], [], []>} : vector<8x8xbf16>, vector<8x8xbf16>, vector<8x8xf32> -> vector<8x8xf32>
    %cst_20 = arith.constant -1.000000e+09 : f32
    %29 = vector.broadcast %cst_20 : f32 to vector<8x8xf32>
    %30 = arith.select %3, %29, %28 : vector<8x8xi1>, vector<8x8xf32>
    %cst_21 = arith.constant dense<0xFF800000> : vector<8xf32>
    %31 = vector.multi_reduction <maximumf>, %30, %cst_21 [1] : vector<8x8xf32> to vector<8xf32>
    %32 = vector.shape_cast %31 : vector<8xf32> to vector<8x1xf32>
    %33 = vector.broadcast %32 : vector<8x1xf32> to vector<8x8xf32>
    %34 = arith.subf %30, %33 : vector<8x8xf32>
    %35 = math.exp %34 : vector<8x8xf32>
    %cst_22 = arith.constant dense<0.000000e+00> : vector<8xf32>
    %36 = vector.multi_reduction <add>, %35, %cst_22 [1] : vector<8x8xf32> to vector<8xf32>
    %37 = vector.shape_cast %36 : vector<8xf32> to vector<8x1xf32>
    %38 = tpu.reciprocal %37 {approx = true} : vector<8x1xf32> -> vector<8x1xf32>
    %39 = vector.broadcast %38 : vector<8x1xf32> to vector<8x8xf32>
    %40 = arith.mulf %35, %39 : vector<8x8xf32>
    %41 = arith.truncf %40 : vector<8x8xf32> to vector<8x8xbf16>
    %42 = vector.extract_strided_slice %25 {offsets = [0, 0], sizes = [8, 8], strides = [1, 1]} : vector<8x32xbf16> to vector<8x8xbf16>
    %cst_23 = arith.constant dense<0.000000e+00> : vector<8x8xf32>
    %43 = tpu.matmul %41, %42, %cst_23 {dimension_numbers = #tpu.dot_dimension_numbers<[1], [0], [0], [1], [0, 0, 1, 1], [], []>} : vector<8x8xbf16>, vector<8x8xbf16>, vector<8x8xf32> -> vector<8x8xf32>
    %44 = vector.extract_strided_slice %21 {offsets = [0, 8], sizes = [8, 8], strides = [1, 1]} : vector<8x32xbf16> to vector<8x8xbf16>
    %45 = vector.extract_strided_slice %23 {offsets = [0, 8], sizes = [8, 8], strides = [1, 1]} : vector<8x32xbf16> to vector<8x8xbf16>
    %cst_24 = arith.constant dense<0.000000e+00> : vector<8x8xf32>
    %46 = tpu.matmul %44, %45, %cst_24 {dimension_numbers = #tpu.dot_dimension_numbers<[1], [1], [0], [0], [0, 0, 1, 0], [], []>} : vector<8x8xbf16>, vector<8x8xbf16>, vector<8x8xf32> -> vector<8x8xf32>
    %cst_25 = arith.constant -1.000000e+09 : f32
    %47 = vector.broadcast %cst_25 : f32 to vector<8x8xf32>
    %48 = arith.select %3, %47, %46 : vector<8x8xi1>, vector<8x8xf32>
    %cst_26 = arith.constant dense<0xFF800000> : vector<8xf32>
    %49 = vector.multi_reduction <maximumf>, %48, %cst_26 [1] : vector<8x8xf32> to vector<8xf32>
    %50 = vector.shape_cast %49 : vector<8xf32> to vector<8x1xf32>
    %51 = vector.broadcast %50 : vector<8x1xf32> to vector<8x8xf32>
    %52 = arith.subf %48, %51 : vector<8x8xf32>
    %53 = math.exp %52 : vector<8x8xf32>
    %cst_27 = arith.constant dense<0.000000e+00> : vector<8xf32>
    %54 = vector.multi_reduction <add>, %53, %cst_27 [1] : vector<8x8xf32> to vector<8xf32>
    %55 = vector.shape_cast %54 : vector<8xf32> to vector<8x1xf32>
    %56 = tpu.reciprocal %55 {approx = true} : vector<8x1xf32> -> vector<8x1xf32>
    %57 = vector.broadcast %56 : vector<8x1xf32> to vector<8x8xf32>
    %58 = arith.mulf %53, %57 : vector<8x8xf32>
    %59 = arith.truncf %58 : vector<8x8xf32> to vector<8x8xbf16>
    %60 = vector.extract_strided_slice %25 {offsets = [0, 8], sizes = [8, 8], strides = [1, 1]} : vector<8x32xbf16> to vector<8x8xbf16>
    %cst_28 = arith.constant dense<0.000000e+00> : vector<8x8xf32>
    %61 = tpu.matmul %59, %60, %cst_28 {dimension_numbers = #tpu.dot_dimension_numbers<[1], [0], [0], [1], [0, 0, 1, 1], [], []>} : vector<8x8xbf16>, vector<8x8xbf16>, vector<8x8xf32> -> vector<8x8xf32>
    %62 = vector.extract_strided_slice %21 {offsets = [0, 16], sizes = [8, 8], strides = [1, 1]} : vector<8x32xbf16> to vector<8x8xbf16>
    %63 = vector.extract_strided_slice %23 {offsets = [0, 16], sizes = [8, 8], strides = [1, 1]} : vector<8x32xbf16> to vector<8x8xbf16>
    %cst_29 = arith.constant dense<0.000000e+00> : vector<8x8xf32>
    %64 = tpu.matmul %62, %63, %cst_29 {dimension_numbers = #tpu.dot_dimension_numbers<[1], [1], [0], [0], [0, 0, 1, 0], [], []>} : vector<8x8xbf16>, vector<8x8xbf16>, vector<8x8xf32> -> vector<8x8xf32>
    %cst_30 = arith.constant -1.000000e+09 : f32
    %65 = vector.broadcast %cst_30 : f32 to vector<8x8xf32>
    %66 = arith.select %3, %65, %64 : vector<8x8xi1>, vector<8x8xf32>
    %cst_31 = arith.constant dense<0xFF800000> : vector<8xf32>
    %67 = vector.multi_reduction <maximumf>, %66, %cst_31 [1] : vector<8x8xf32> to vector<8xf32>
    %68 = vector.shape_cast %67 : vector<8xf32> to vector<8x1xf32>
    %69 = vector.broadcast %68 : vector<8x1xf32> to vector<8x8xf32>
    %70 = arith.subf %66, %69 : vector<8x8xf32>
    %71 = math.exp %70 : vector<8x8xf32>
    %cst_32 = arith.constant dense<0.000000e+00> : vector<8xf32>
    %72 = vector.multi_reduction <add>, %71, %cst_32 [1] : vector<8x8xf32> to vector<8xf32>
    %73 = vector.shape_cast %72 : vector<8xf32> to vector<8x1xf32>
    %74 = tpu.reciprocal %73 {approx = true} : vector<8x1xf32> -> vector<8x1xf32>
    %75 = vector.broadcast %74 : vector<8x1xf32> to vector<8x8xf32>
    %76 = arith.mulf %71, %75 : vector<8x8xf32>
    %77 = arith.truncf %76 : vector<8x8xf32> to vector<8x8xbf16>
    %78 = vector.extract_strided_slice %25 {offsets = [0, 16], sizes = [8, 8], strides = [1, 1]} : vector<8x32xbf16> to vector<8x8xbf16>
    %cst_33 = arith.constant dense<0.000000e+00> : vector<8x8xf32>
    %79 = tpu.matmul %77, %78, %cst_33 {dimension_numbers = #tpu.dot_dimension_numbers<[1], [0], [0], [1], [0, 0, 1, 1], [], []>} : vector<8x8xbf16>, vector<8x8xbf16>, vector<8x8xf32> -> vector<8x8xf32>
    %80 = vector.extract_strided_slice %21 {offsets = [0, 24], sizes = [8, 8], strides = [1, 1]} : vector<8x32xbf16> to vector<8x8xbf16>
    %81 = vector.extract_strided_slice %23 {offsets = [0, 24], sizes = [8, 8], strides = [1, 1]} : vector<8x32xbf16> to vector<8x8xbf16>
    %cst_34 = arith.constant dense<0.000000e+00> : vector<8x8xf32>
    %82 = tpu.matmul %80, %81, %cst_34 {dimension_numbers = #tpu.dot_dimension_numbers<[1], [1], [0], [0], [0, 0, 1, 0], [], []>} : vector<8x8xbf16>, vector<8x8xbf16>, vector<8x8xf32> -> vector<8x8xf32>
    %cst_35 = arith.constant -1.000000e+09 : f32
    %83 = vector.broadcast %cst_35 : f32 to vector<8x8xf32>
    %84 = arith.select %3, %83, %82 : vector<8x8xi1>, vector<8x8xf32>
    %cst_36 = arith.constant dense<0xFF800000> : vector<8xf32>
    %85 = vector.multi_reduction <maximumf>, %84, %cst_36 [1] : vector<8x8xf32> to vector<8xf32>
    %86 = vector.shape_cast %85 : vector<8xf32> to vector<8x1xf32>
    %87 = vector.broadcast %86 : vector<8x1xf32> to vector<8x8xf32>
    %88 = arith.subf %84, %87 : vector<8x8xf32>
    %89 = math.exp %88 : vector<8x8xf32>
    %cst_37 = arith.constant dense<0.000000e+00> : vector<8xf32>
    %90 = vector.multi_reduction <add>, %89, %cst_37 [1] : vector<8x8xf32> to vector<8xf32>
    %91 = vector.shape_cast %90 : vector<8xf32> to vector<8x1xf32>
    %92 = tpu.reciprocal %91 {approx = true} : vector<8x1xf32> -> vector<8x1xf32>
    %93 = vector.broadcast %92 : vector<8x1xf32> to vector<8x8xf32>
    %94 = arith.mulf %89, %93 : vector<8x8xf32>
    %95 = arith.truncf %94 : vector<8x8xf32> to vector<8x8xbf16>
    %96 = vector.extract_strided_slice %25 {offsets = [0, 24], sizes = [8, 8], strides = [1, 1]} : vector<8x32xbf16> to vector<8x8xbf16>
    %cst_38 = arith.constant dense<0.000000e+00> : vector<8x8xf32>
    %97 = tpu.matmul %95, %96, %cst_38 {dimension_numbers = #tpu.dot_dimension_numbers<[1], [0], [0], [1], [0, 0, 1, 1], [], []>} : vector<8x8xbf16>, vector<8x8xbf16>, vector<8x8xf32> -> vector<8x8xf32>
    %98 = tpu.concatenate %43, %61, %79, %97 in 1 : vector<8x8xf32>, vector<8x8xf32>, vector<8x8xf32>, vector<8x8xf32> -> vector<8x32xf32>
    %99 = arith.truncf %98 : vector<8x32xf32> to vector<8x32xbf16>
    %cst_39 = arith.constant dense<0.000000e+00> : vector<8x32xf32>
    %100 = tpu.matmul %99, %13, %cst_39 {dimension_numbers = #tpu.dot_dimension_numbers<[1], [0], [0], [1], [0, 0, 1, 1], [], []>} : vector<8x32xbf16>, vector<32x32xbf16>, vector<8x32xf32> -> vector<8x32xf32>
    %101 = vector.broadcast %5 : vector<1x32xf32> to vector<8x32xf32>
    %102 = arith.addf %100, %101 : vector<8x32xf32>
    %103 = arith.addf %0, %102 : vector<8x32xf32>
    %cst_40 = arith.constant dense<0.000000e+00> : vector<8xf32>
    %104 = vector.multi_reduction <add>, %103, %cst_40 [1] : vector<8x32xf32> to vector<8xf32>
    %105 = vector.shape_cast %104 : vector<8xf32> to vector<8x1xf32>
    %cst_41 = arith.constant 3.200000e+01 : f32
    %106 = vector.broadcast %cst_41 : f32 to vector<8x1xf32>
    %107 = arith.divf %105, %106 : vector<8x1xf32>
    %108 = vector.broadcast %107 : vector<8x1xf32> to vector<8x32xf32>
    %109 = arith.subf %103, %108 : vector<8x32xf32>
    %110 = arith.mulf %109, %109 : vector<8x32xf32>
    %cst_42 = arith.constant dense<0.000000e+00> : vector<8xf32>
    %111 = vector.multi_reduction <add>, %110, %cst_42 [1] : vector<8x32xf32> to vector<8xf32>
    %112 = vector.shape_cast %111 : vector<8xf32> to vector<8x1xf32>
    %cst_43 = arith.constant 3.200000e+01 : f32
    %113 = vector.broadcast %cst_43 : f32 to vector<8x1xf32>
    %114 = arith.divf %112, %113 : vector<8x1xf32>
    %115 = vector.broadcast %107 : vector<8x1xf32> to vector<8x32xf32>
    %116 = arith.subf %103, %115 : vector<8x32xf32>
    %cst_44 = arith.constant 9.99999974E-6 : f32
    %117 = vector.broadcast %cst_44 : f32 to vector<8x1xf32>
    %118 = arith.addf %114, %117 : vector<8x1xf32>
    %119 = math.rsqrt %118 : vector<8x1xf32>
    %120 = vector.broadcast %119 : vector<8x1xf32> to vector<8x32xf32>
    %121 = arith.mulf %116, %120 : vector<8x32xf32>
    %122 = vector.broadcast %8 : vector<1x32xf32> to vector<8x32xf32>
    %123 = arith.mulf %121, %122 : vector<8x32xf32>
    %124 = vector.broadcast %9 : vector<1x32xf32> to vector<8x32xf32>
    %125 = arith.addf %123, %124 : vector<8x32xf32>
    %126 = arith.truncf %125 : vector<8x32xf32> to vector<8x32xbf16>
    %cst_45 = arith.constant dense<0.000000e+00> : vector<8x64xf32>
    %127 = tpu.matmul %126, %14, %cst_45 {dimension_numbers = #tpu.dot_dimension_numbers<[1], [0], [0], [1], [0, 0, 1, 1], [], []>} : vector<8x32xbf16>, vector<32x64xbf16>, vector<8x64xf32> -> vector<8x64xf32>
    %128 = vector.broadcast %6 : vector<1x64xf32> to vector<8x64xf32>
    %129 = arith.addf %127, %128 : vector<8x64xf32>
    %cst_46 = arith.constant 5.000000e-01 : f32
    %130 = vector.broadcast %cst_46 : f32 to vector<8x64xf32>
    %131 = arith.mulf %130, %129 : vector<8x64xf32>
    %cst_47 = arith.constant 0.707106769 : f32
    %132 = vector.broadcast %cst_47 : f32 to vector<8x64xf32>
    %133 = arith.mulf %129, %132 : vector<8x64xf32>
    %134 = math.absf %133 : vector<8x64xf32>
    %cst_48 = arith.constant 0.327591091 : f32
    %135 = vector.broadcast %cst_48 : f32 to vector<8x64xf32>
    %136 = arith.mulf %135, %134 : vector<8x64xf32>
    %cst_49 = arith.constant 1.000000e+00 : f32
    %137 = vector.broadcast %cst_49 : f32 to vector<8x64xf32>
    %138 = arith.addf %137, %136 : vector<8x64xf32>
    %cst_50 = arith.constant 1.000000e+00 : f32
    %139 = vector.broadcast %cst_50 : f32 to vector<8x64xf32>
    %140 = arith.divf %139, %138 : vector<8x64xf32>
    %cst_51 = arith.constant 1.06140542 : f32
    %141 = vector.broadcast %cst_51 : f32 to vector<8x64xf32>
    %142 = arith.mulf %140, %141 : vector<8x64xf32>
    %cst_52 = arith.constant -1.45315206 : f32
    %143 = vector.broadcast %cst_52 : f32 to vector<8x64xf32>
    %144 = arith.addf %143, %142 : vector<8x64xf32>
    %145 = arith.mulf %140, %144 : vector<8x64xf32>
    %cst_53 = arith.constant 1.42141378 : f32
    %146 = vector.broadcast %cst_53 : f32 to vector<8x64xf32>
    %147 = arith.addf %146, %145 : vector<8x64xf32>
    %148 = arith.mulf %140, %147 : vector<8x64xf32>
    %cst_54 = arith.constant -0.284496725 : f32
    %149 = vector.broadcast %cst_54 : f32 to vector<8x64xf32>
    %150 = arith.addf %149, %148 : vector<8x64xf32>
    %151 = arith.mulf %140, %150 : vector<8x64xf32>
    %cst_55 = arith.constant 0.254829586 : f32
    %152 = vector.broadcast %cst_55 : f32 to vector<8x64xf32>
    %153 = arith.addf %152, %151 : vector<8x64xf32>
    %154 = arith.mulf %140, %153 : vector<8x64xf32>
    %cst_56 = arith.constant 0.000000e+00 : f32
    %155 = vector.broadcast %cst_56 : f32 to vector<8x64xf32>
    %156 = arith.subf %155, %134 : vector<8x64xf32>
    %157 = arith.mulf %156, %134 : vector<8x64xf32>
    %158 = math.exp %157 : vector<8x64xf32>
    %159 = arith.mulf %154, %158 : vector<8x64xf32>
    %cst_57 = arith.constant 1.000000e+00 : f32
    %160 = vector.broadcast %cst_57 : f32 to vector<8x64xf32>
    %161 = arith.subf %160, %159 : vector<8x64xf32>
    %cst_58 = arith.constant 0.000000e+00 : f32
    %162 = vector.broadcast %cst_58 : f32 to vector<8x64xf32>
    %163 = arith.cmpf oge, %133, %162 : vector<8x64xf32>
    %cst_59 = arith.constant 0.000000e+00 : f32
    %164 = vector.broadcast %cst_59 : f32 to vector<8x64xf32>
    %165 = arith.subf %164, %161 : vector<8x64xf32>
    %166 = arith.select %163, %161, %165 : vector<8x64xi1>, vector<8x64xf32>
    %cst_60 = arith.constant 1.000000e+00 : f32
    %167 = vector.broadcast %cst_60 : f32 to vector<8x64xf32>
    %168 = arith.addf %167, %166 : vector<8x64xf32>
    %169 = arith.mulf %131, %168 : vector<8x64xf32>
    %170 = arith.truncf %169 : vector<8x64xf32> to vector<8x64xbf16>
    %cst_61 = arith.constant dense<0.000000e+00> : vector<8x32xf32>
    %171 = tpu.matmul %170, %15, %cst_61 {dimension_numbers = #tpu.dot_dimension_numbers<[1], [1], [0], [0], [0, 0, 1, 0], [], []>} : vector<8x64xbf16>, vector<32x64xbf16>, vector<8x32xf32> -> vector<8x32xf32>
    %172 = vector.broadcast %7 : vector<1x32xf32> to vector<8x32xf32>
    %173 = arith.addf %171, %172 : vector<8x32xf32>
    %174 = arith.addf %125, %173 : vector<8x32xf32>
    %cst_62 = arith.constant dense<0.000000e+00> : vector<8xf32>
    %175 = vector.multi_reduction <add>, %174, %cst_62 [1] : vector<8x32xf32> to vector<8xf32>
    %176 = vector.shape_cast %175 : vector<8xf32> to vector<8x1xf32>
    %cst_63 = arith.constant 3.200000e+01 : f32
    %177 = vector.broadcast %cst_63 : f32 to vector<8x1xf32>
    %178 = arith.divf %176, %177 : vector<8x1xf32>
    %179 = vector.broadcast %178 : vector<8x1xf32> to vector<8x32xf32>
    %180 = arith.subf %174, %179 : vector<8x32xf32>
    %181 = arith.mulf %180, %180 : vector<8x32xf32>
    %cst_64 = arith.constant dense<0.000000e+00> : vector<8xf32>
    %182 = vector.multi_reduction <add>, %181, %cst_64 [1] : vector<8x32xf32> to vector<8xf32>
    %183 = vector.shape_cast %182 : vector<8xf32> to vector<8x1xf32>
    %cst_65 = arith.constant 3.200000e+01 : f32
    %184 = vector.broadcast %cst_65 : f32 to vector<8x1xf32>
    %185 = arith.divf %183, %184 : vector<8x1xf32>
    %186 = vector.broadcast %178 : vector<8x1xf32> to vector<8x32xf32>
    %187 = arith.subf %174, %186 : vector<8x32xf32>
    %cst_66 = arith.constant 9.99999974E-6 : f32
    %188 = vector.broadcast %cst_66 : f32 to vector<8x1xf32>
    %189 = arith.addf %185, %188 : vector<8x1xf32>
    %190 = math.rsqrt %189 : vector<8x1xf32>
    %191 = vector.broadcast %190 : vector<8x1xf32> to vector<8x32xf32>
    %192 = arith.mulf %187, %191 : vector<8x32xf32>
    %193 = vector.broadcast %10 : vector<1x32xf32> to vector<8x32xf32>
    %194 = arith.mulf %192, %193 : vector<8x32xf32>
    %195 = vector.broadcast %11 : vector<1x32xf32> to vector<8x32xf32>
    %196 = arith.addf %194, %195 : vector<8x32xf32>
    %c0_67 = arith.constant 0 : index
    %c0_68 = arith.constant 0 : index
    %197 = vector.load %arg6[%c0_67, %c0_68] : memref<8x32xf32, #tpu.memory_space<vmem>>, vector<8x32xf32>
    tpu.vector_store %arg6[%c0_67, %c0_68], %196 {strides = array<i32>} : memref<8x32xf32, #tpu.memory_space<vmem>>, vector<8x32xf32>,
    return
  }
  func.func @transform_0(%arg0: i32) -> (i32, i32) {
    %c0_i32 = arith.constant 0 : i32
    %c0_i32_0 = arith.constant 0 : i32
    return %arg0, %c0_i32 : i32, i32
  }
  func.func @transform_1(%arg0: i32) -> (i32, i32) {
    %c0_i32 = arith.constant 0 : i32
    %c0_i32_0 = arith.constant 0 : i32
    return %arg0, %c0_i32 : i32, i32
  }
  func.func @transform_2(%arg0: i32) -> (i32, i32) {
    %c0_i32 = arith.constant 0 : i32
    %c0_i32_0 = arith.constant 0 : i32
    %c0_i32_1 = arith.constant 0 : i32
    return %c0_i32, %c0_i32_0 : i32, i32
  }
  func.func @transform_3(%arg0: i32) -> (i32, i32) {
    %c0_i32 = arith.constant 0 : i32
    %c0_i32_0 = arith.constant 0 : i32
    %c0_i32_1 = arith.constant 0 : i32
    return %c0_i32, %c0_i32_0 : i32, i32
  }
  func.func @transform_4(%arg0: i32) -> (i32, i32) {
    %c0_i32 = arith.constant 0 : i32
    %c0_i32_0 = arith.constant 0 : i32
    %c0_i32_1 = arith.constant 0 : i32
    return %c0_i32, %c0_i32_0 : i32, i32
  }
  func.func @transform_5(%arg0: i32) -> (i32, i32) {
    %c0_i32 = arith.constant 0 : i32
    %c0_i32_0 = arith.constant 0 : i32
    return %arg0, %c0_i32 : i32, i32
  }
}

</mosaic_0001>

<llo_original>
// kernel: tpu_custom_call.1
$region0: #{tpu_custom_call.1}
  #allocation0 [shape = 'u32[]', space=smem, size = 0x4, offset = 0x4, fixed_abs, tag = 'smem constant byte address 0x4 - core index']
  #allocation1 [shape = 'u32[144,128]{1,0:T(1,128)}', space=vmem, size = 0x12000, scoped, tag = 'internal scratch']
  %s0 = inlined_call_operand.vmem [shape: f32[16,32], index: 0, kind: input, shape index: {}]
  %s1 = inlined_call_operand.vmem [shape: f32[16,8], index: 1, kind: input, shape index: {}]
  %s2 = inlined_call_operand.hbm [shape: bf16[32,128], index: 2, kind: input, shape index: {}]
  %s3 = inlined_call_operand.hbm [shape: bf16[32,128], index: 3, kind: input, shape index: {}]
  %s4 = inlined_call_operand.vmem [shape: f32[8,128], index: 4, kind: input, shape index: {}]
  %s5 = inlined_call_operand.hbm [shape: f32[16,32], index: 5, kind: output, shape index: {}]
  %s6 = sld [smem:[#allocation0]]
  $region61: #{tpu_custom_call.1} parent=0
    _
  %s8 = ssub.s32 1, %s6
  %s9 = scalar_select 0, %s8, %s6
  $region1: #{tpu_custom_call.1} parent=0
    #allocation2 [shape = 'u8[8192]{0}', space=vmem, size = 0x2000, scoped, tag = 'input window, operand 2, single buffered']
    #allocation3 [shape = 's32[2]{0}', space=sflag, size = 0x8, scoped, tag = 'scoped memory for tpu_custom_call.1']
    #allocation4 [shape = 's32[2]{0}', space=sflag, size = 0x8, scoped, tag = 'scoped memory for tpu_custom_call.1']
    #allocation5 [shape = 'u8[8192]{0}', space=vmem, size = 0x2000, scoped, tag = 'input window, operand 3, single buffered']
    #allocation6 [shape = 's32[1]{0}', space=sflag, size = 0x4, scoped, tag = 'scoped memory for tpu_custom_call.1']
    #allocation7 [shape = 'u8[8192]{0}', space=vmem, size = 0x2000, scoped, tag = 'output window, operand 0']
    %10 = vsyncpa [#allocation3], 0
    %11 = vsyncpa [#allocation6], 0
    %12 = vsyncpa [#allocation4], 0
    %s13 = scalar_lea.sflag [#allocation4], 1
    %14 = vsyncpa %s13, 0
    loop: start=0, step=1, limit=4
    $region2: #{tpu_custom_call.1} parent=1 // loop_pre_header
      _
    $region3: #{tpu_custom_call.1} parent=1 // loop_header
      %s16 = sphi 0, %s20
      %p17 = scmp.ge.s32.totalorder %s16, 4
      %s26 = sphi 0, %s28
      %s29 = sphi 0, %s26
      %s30 = sphi 0, %s29
      %s46 = sphi 0, %s30
      %s52 = sphi 0, %s54
      %s55 = sphi 0, %s52
      %s56 = sphi 0, %s55
      %s72 = sphi 0, %s56
      %s76 = sphi 0, %s76
      %s78 = sphi 0, %s76
      %s79 = sphi 0, %s78
      %s93 = sphi 0, %s79
      %s97 = sphi 0, %s97
      %s99 = sphi 0, %s97
      %s100 = sphi 0, %s99
      %s114 = sphi 0, %s100
      %s118 = sphi 0, %s118
      %s120 = sphi 0, %s118
      %s121 = sphi 0, %s120
      %s135 = sphi 0, %s121
      %s141 = sphi 0, %s143
      %s144 = sphi 0, %s141
      %s145 = sphi 0, %s144
      %s161 = sphi 0, %s145
    $region4: #{tpu_custom_call.1} parent=1 // loop_header_branch
      %19 = sbr.rel (%p17) target = $region8
    $region5: #{tpu_custom_call.1} parent=1 // loop_body
      %s21 = ssub.s32 %s16, 1
      %s22 = ssub.s32 %s16, 2
      %s23 = sadd.s32 %s16, 1
      %s24 = ssub.s32 %s16, %s23
      %p25 = scmp.eq.s32.totalorder %s24, 0
      %s27 = sadd.s32 %s26, 1
      %s28 = scalar_select %p25, %s26, %s27
      %p31 = pneg %p25
      %p32 = scmp.eq.s32.totalorder %s16, 1
      %p33 = por %p31, %p32
      %p34 = scmp.ne.s32.totalorder %s26, %s29
      %p35 = scmp.eq.s32.totalorder %s16, 0
      %p36 = por %p34, %p35
      %p37 = scmp.ne.s32.totalorder %s26, %s29
      %p38 = scmp.eq.s32.totalorder %s21, 1
      %p39 = por %p37, %p38
      %p40 = scmp.ne.s32.totalorder %s29, %s30
      %p41 = scmp.eq.s32.totalorder %s21, 0
      %p42 = por %p40, %p41
      %p43 = scmp.ne.s32.totalorder %s29, %s30
      %p44 = scmp.eq.s32.totalorder %s22, 1
      %p45 = por %p43, %p44
      %p47 = scmp.ne.s32.totalorder %s30, %s46
      %p48 = scmp.eq.s32.totalorder %s22, 0
      %p49 = por %p47, %p48
      %s50 = ssub.s32 %s16, %s23
      %p51 = scmp.eq.s32.totalorder %s50, 0
      %s53 = sadd.s32 %s52, 1
      %s54 = scalar_select %p51, %s52, %s53
      %p57 = pneg %p51
      %p58 = scmp.eq.s32.totalorder %s16, 1
      %p59 = por %p57, %p58
      %p60 = scmp.ne.s32.totalorder %s52, %s55
      %p61 = scmp.eq.s32.totalorder %s16, 0
      %p62 = por %p60, %p61
      %p63 = scmp.ne.s32.totalorder %s52, %s55
      %p64 = scmp.eq.s32.totalorder %s21, 1
      %p65 = por %p63, %p64
      %p66 = scmp.ne.s32.totalorder %s55, %s56
      %p67 = scmp.eq.s32.totalorder %s21, 0
      %p68 = por %p66, %p67
      %p69 = scmp.ne.s32.totalorder %s55, %s56
      %p70 = scmp.eq.s32.totalorder %s22, 1
      %p71 = por %p69, %p70
      %p73 = scmp.ne.s32.totalorder %s56, %s72
      %p74 = scmp.eq.s32.totalorder %s22, 0
      %p75 = por %p73, %p74
      %s77 = sadd.s32 %s76, 1
      %p80 = scmp.eq.s32.totalorder %s16, 1
      %p81 = scmp.ne.s32.totalorder %s76, %s78
      %p82 = scmp.eq.s32.totalorder %s16, 0
      %p83 = por %p81, %p82
      %p84 = scmp.ne.s32.totalorder %s76, %s78
      %p85 = scmp.eq.s32.totalorder %s21, 1
      %p86 = por %p84, %p85
      %p87 = scmp.ne.s32.totalorder %s78, %s79
      %p88 = scmp.eq.s32.totalorder %s21, 0
      %p89 = por %p87, %p88
      %p90 = scmp.ne.s32.totalorder %s78, %s79
      %p91 = scmp.eq.s32.totalorder %s22, 1
      %p92 = por %p90, %p91
      %p94 = scmp.ne.s32.totalorder %s79, %s93
      %p95 = scmp.eq.s32.totalorder %s22, 0
      %p96 = por %p94, %p95
      %s98 = sadd.s32 %s97, 1
      %p101 = scmp.eq.s32.totalorder %s16, 1
      %p102 = scmp.ne.s32.totalorder %s97, %s99
      %p103 = scmp.eq.s32.totalorder %s16, 0
      %p104 = por %p102, %p103
      %p105 = scmp.ne.s32.totalorder %s97, %s99
      %p106 = scmp.eq.s32.totalorder %s21, 1
      %p107 = por %p105, %p106
      %p108 = scmp.ne.s32.totalorder %s99, %s100
      %p109 = scmp.eq.s32.totalorder %s21, 0
      %p110 = por %p108, %p109
      %p111 = scmp.ne.s32.totalorder %s99, %s100
      %p112 = scmp.eq.s32.totalorder %s22, 1
      %p113 = por %p111, %p112
      %p115 = scmp.ne.s32.totalorder %s100, %s114
      %p116 = scmp.eq.s32.totalorder %s22, 0
      %p117 = por %p115, %p116
      %s119 = sadd.s32 %s118, 1
      %p122 = scmp.eq.s32.totalorder %s16, 1
      %p123 = scmp.ne.s32.totalorder %s118, %s120
      %p124 = scmp.eq.s32.totalorder %s16, 0
      %p125 = por %p123, %p124
      %p126 = scmp.ne.s32.totalorder %s118, %s120
      %p127 = scmp.eq.s32.totalorder %s21, 1
      %p128 = por %p126, %p127
      %p129 = scmp.ne.s32.totalorder %s120, %s121
      %p130 = scmp.eq.s32.totalorder %s21, 0
      %p131 = por %p129, %p130
      %p132 = scmp.ne.s32.totalorder %s120, %s121
      %p133 = scmp.eq.s32.totalorder %s22, 1
      %p134 = por %p132, %p133
      %p136 = scmp.ne.s32.totalorder %s121, %s135
      %p137 = scmp.eq.s32.totalorder %s22, 0
      %p138 = por %p136, %p137
      %s139 = ssub.s32 %s16, %s23
      %p140 = scmp.eq.s32.totalorder %s139, 0
      %s142 = sadd.s32 %s141, 1
      %s143 = scalar_select %p140, %s141, %s142
      %p146 = pneg %p140
      %p147 = scmp.eq.s32.totalorder %s16, 1
      %p148 = por %p146, %p147
      %p149 = scmp.ne.s32.totalorder %s141, %s144
      %p150 = scmp.eq.s32.totalorder %s16, 0
      %p151 = por %p149, %p150
      %p152 = scmp.ne.s32.totalorder %s141, %s144
      %p153 = scmp.eq.s32.totalorder %s21, 1
      %p154 = por %p152, %p153
      %p155 = scmp.ne.s32.totalorder %s144, %s145
      %p156 = scmp.eq.s32.totalorder %s21, 0
      %p157 = por %p155, %p156
      %p158 = scmp.ne.s32.totalorder %s144, %s145
      %p159 = scmp.eq.s32.totalorder %s22, 1
      %p160 = por %p158, %p159
      %p162 = scmp.ne.s32.totalorder %s145, %s161
      %p163 = scmp.eq.s32.totalorder %s22, 0
      %p164 = por %p162, %p163
      %p165 = scmp.le.s32.totalorder 1, %s16
      %p166 = scmp.lt.s32.totalorder %s16, 3
      %p167 = pnand %p165, %p166
      %p168 = pneg %p167
      // Predicated region
      $region9: #{tpu_custom_call.1} parent=5 // pred_check
        _
      $region10: #{tpu_custom_call.1} parent=5 // pred_check_branch
        %170 = sbr.rel (%p167) target = $region12
      $region11: #{tpu_custom_call.1} parent=5 // pred_region
        %s171 = ssub.s32 %s16, 1
        // Predicated region
        $region13: #{tpu_custom_call.1} parent=11 // pred_check
          %p172 = pneg %p89
        $region14: #{tpu_custom_call.1} parent=11 // pred_check_branch
          %174 = sbr.rel (%p172) target = $region16
        $region15: #{tpu_custom_call.1} parent=11 // pred_region
          %s176 = ssub.s32 256, 256
          %177 = vsyncadd [#allocation3], %s176
          %s178 = sshll.u32 [#allocation2], 4
          %s179 = int_to_ptr.vmem [resolvable:$true] %s178
          %184 = dma.hbm_to_vmem [thread:$0]  %s2, 256, %s179, [#allocation3], 64, 64, 4
        $region16: #{tpu_custom_call.1} parent=11 // pred_fallthru
          _
        // Predicated region
        $region17: #{tpu_custom_call.1} parent=11 // pred_check
          %p185 = pneg %p110
        $region18: #{tpu_custom_call.1} parent=11 // pred_check_branch
          %187 = sbr.rel (%p185) target = $region20
        $region19: #{tpu_custom_call.1} parent=11 // pred_region
          %s189 = ssub.s32 256, 256
          %190 = vsyncadd [#allocation6], %s189
          %s191 = sshll.u32 [#allocation5], 4
          %s192 = int_to_ptr.vmem [resolvable:$true] %s191
          %197 = dma.hbm_to_vmem [thread:$0]  %s3, 256, %s192, [#allocation6], 64, 64, 4
        $region20: #{tpu_custom_call.1} parent=11 // pred_fallthru
          _
        // Predicated region
        $region21: #{tpu_custom_call.1} parent=11 // pred_check
          %p198 = pneg %p131
        $region22: #{tpu_custom_call.1} parent=11 // pred_check_branch
          %200 = sbr.rel (%p198) target = $region24
        $region23: #{tpu_custom_call.1} parent=11 // pred_region
          _
        $region24: #{tpu_custom_call.1} parent=11 // pred_fallthru
          _
      $region12: #{tpu_custom_call.1} parent=5 // pred_fallthru
        _
      %p201 = scmp.lt.s32.totalorder %s16, 2
      // Predicated region
      $region25: #{tpu_custom_call.1} parent=5 // pred_check
        %p202 = pneg %p201
      $region26: #{tpu_custom_call.1} parent=5 // pred_check_branch
        %204 = sbr.rel (%p202) target = $region28
      $region27: #{tpu_custom_call.1} parent=5 // pred_region
        // Predicated region
        $region29: #{tpu_custom_call.1} parent=27 // pred_check
          %p205 = pneg %p36
        $region30: #{tpu_custom_call.1} parent=27 // pred_check_branch
          %207 = sbr.rel (%p205) target = $region32
        $region31: #{tpu_custom_call.1} parent=27 // pred_region
          %p208 = scmp.lt.s32.totalorder %s16, 1
          %s209 = scalar_select %p208, %s16, 1
          %s210 = smul.addr %s209, 8
          %s211 = scalar_lea.vmem %s0, %s210
        $region32: #{tpu_custom_call.1} parent=27 // pred_fallthru
          _
        // Predicated region
        $region33: #{tpu_custom_call.1} parent=27 // pred_check
          %p212 = pneg %p62
        $region34: #{tpu_custom_call.1} parent=27 // pred_check_branch
          %214 = sbr.rel (%p212) target = $region36
        $region35: #{tpu_custom_call.1} parent=27 // pred_region
          %p215 = scmp.lt.s32.totalorder %s16, 1
          %s216 = scalar_select %p215, %s16, 1
          %s217 = smul.addr %s216, 8
          %s218 = scalar_lea.vmem %s1, %s217
        $region36: #{tpu_custom_call.1} parent=27 // pred_fallthru
          _
      $region28: #{tpu_custom_call.1} parent=5 // pred_fallthru
        _
      %p219 = scmp.le.s32.totalorder 1, %s16
      %p220 = scmp.lt.s32.totalorder %s16, 3
      %p221 = pnand %p219, %p220
      %p222 = pneg %p221
      // Predicated region
      $region37: #{tpu_custom_call.1} parent=5 // pred_check
        _
      $region38: #{tpu_custom_call.1} parent=5 // pred_check_branch
        %224 = sbr.rel (%p221) target = $region40
      $region39: #{tpu_custom_call.1} parent=5 // pred_region
        %s225 = ssub.s32 %s16, 1
        // Predicated region
        $region41: #{tpu_custom_call.1} parent=39 // pred_check
          %p226 = pneg %p89
        $region42: #{tpu_custom_call.1} parent=39 // pred_check_branch
          %228 = sbr.rel (%p226) target = $region44
        $region43: #{tpu_custom_call.1} parent=39 // pred_region
          %229 = dma.done [#allocation3], 256
        $region44: #{tpu_custom_call.1} parent=39 // pred_fallthru
          _
        // Predicated region
        $region45: #{tpu_custom_call.1} parent=39 // pred_check
          %p230 = pneg %p110
        $region46: #{tpu_custom_call.1} parent=39 // pred_check_branch
          %232 = sbr.rel (%p230) target = $region48
        $region47: #{tpu_custom_call.1} parent=39 // pred_region
          %233 = dma.done [#allocation6], 256
        $region48: #{tpu_custom_call.1} parent=39 // pred_fallthru
          _
        %p234 = scmp.lt.s32.totalorder %s21, 1
        %s235 = scalar_select %p234, %s21, 1
        %s236 = smul.addr %s235, 8
        %s237 = scalar_lea.vmem %s0, %s236
        %p238 = pneg %p42
        %p239 = pneg %p39
        %p240 = scmp.lt.s32.totalorder %s21, 1
        %s241 = scalar_select %p240, %s21, 1
        %s242 = smul.addr %s241, 8
        %s243 = scalar_lea.vmem %s1, %s242
        %p244 = pneg %p68
        %p245 = pneg %p65
        %p246 = pneg %p89
        %p247 = pneg %p86
        %p248 = pneg %p110
        %p249 = pneg %p107
        %p250 = pneg %p131
        %p251 = pneg %p128
        %p252 = pneg %p157
        %p253 = pneg %p154
        %s254 = sand.u32 %s144, 1
        %s255 = scalar_lea.sflag [#allocation4], %s254
        %s256 = sand.u32 %s144, 1
        %s257 = smul.addr %s256, 8
        %s258 = scalar_lea.vmem [#allocation7], %s257
        %p259 = scmp.lt.s32.totalorder %s21, 1
        %s260 = scalar_select %p259, %s21, 1
        %s261 = smul.addr %s260, 8
        %s262 = scalar_lea.vmem %s0, %s261
        %p263 = scmp.lt.s32.totalorder %s21, 1
        %s264 = scalar_select %p263, %s21, 1
        %s265 = smul.addr %s264, 8
        %s266 = scalar_lea.vmem %s1, %s265
        %v268 = vld [vmem:[%s262] sm:$0xff]
        %v269 = vld [vmem:[%s266] sm:$0xff]
        %vm270 = vcmp.eq.f32.partialorder %v269, 0.0
        %v271 = vld [vmem:[%s4] sm:$0x1]
        %v272 = vld [vmem:[%s4 + $0x1] sm:$0x1]
        %v273 = vld [vmem:[%s4 + $0x2] sm:$0x1]
        %v274 = vld [vmem:[%s4 + $0x3] sm:$0x1]
        %v275 = vld [vmem:[%s4 + $0x4] sm:$0x1]
        %v276 = vld [vmem:[%s4 + $0x5] sm:$0x1]
        %v277 = vld [vmem:[%s4 + $0x6] sm:$0x1]
        %v278 = vld [vmem:[%s4 + $0x7] sm:$0x1]
        %v279 = vld [vmem:[#allocation2] sm:$0xf]
        %v280 = vld [vmem:[#allocation2 + $0x4] sm:$0xf]
        %v281 = vld [vmem:[#allocation2 + $0x8] sm:$0xf]
        %v282 = vld [vmem:[#allocation2 + $0xc] sm:$0xf]
        %v283 = vld [vmem:[#allocation5] sm:$0xf]
        %v284 = vld [vmem:[#allocation5 + $0x4] sm:$0xf]
        %v285 = vld [vmem:[#allocation5 + $0x8] sm:$0xf]
        %v286 = vld [vmem:[#allocation5 + $0xc] sm:$0xf]
        %v287 = vpack.c.bf16 %v268, %v268
        %v288 = vlaneseq
        %v289 = vshrl.u32 %v288, 7
        %v290 = vsub.s32 0, %v289
        %v291 = vrot.slane %v271, %v290
        %v296 = vunpack.c.l.b16 %v279
        %v297 = vunpack.c.l.b16 %v280
        %v298 = vunpack.c.l.b16 %v281
        %v299 = vunpack.c.l.b16 %v282
        %v300 = vpack.c.b16 %v297, %v296
        %v301 = vpack.c.b16 %v299, %v298
        %vm304 = vcmask 261120
        %v306 = vsel %vm304, %v287, 0
        %308 = vmatprep.subr.bf16.mxu0 0
        %309 = vmatpush1.bf16.msra.mxu0 0
        %310 = vmatprep.subr.bf16.mxu0 0
        %311 = vmatpush1.bf16.msra.mxu0 0
        %312 = vmatprep.subr.bf16.mxu0 0
        %313 = vmatpush1.bf16.msra.mxu0 0
        %314 = vmatprep.subr.bf16.mxu0 0
        %315 = vmatpush1.bf16.msra.mxu0 0
        %316 = vmatprep.subr.bf16.mxu0 0
        %317 = vmatpush1.bf16.msra.mxu0 0
        %318 = vmatprep.subr.bf16.mxu0 0
        %319 = vmatpush1.bf16.msra.mxu0 0
        %320 = vmatprep.subr.bf16.mxu0 0
        %321 = vmatpush1.bf16.msra.mxu0 %v301
        %322 = vmatprep.subr.bf16.mxu0 0
        %323 = vmatpush1.bf16.msra.mxu0 %v300
        %324 = vmatprep.subr.bf16.mxu0 0
        %325 = vmatpush2.bf16.msra.mxu0 0
        %326 = vmatprep.subr.bf16.mxu0 0
        %327 = vmatpush2.bf16.msra.mxu0 0
        %328 = vmatprep.subr.bf16.mxu0 0
        %329 = vmatpush2.bf16.msra.mxu0 0
        %330 = vmatprep.subr.bf16.mxu0 0
        %331 = vmatpush2.bf16.msra.mxu0 0
        %332 = vmatprep.subr.bf16.mxu0 0
        %333 = vmatpush2.bf16.msra.mxu0 0
        %334 = vmatprep.subr.bf16.mxu0 0
        %335 = vmatpush2.bf16.msra.mxu0 0
        %336 = vmatprep.subr.bf16.mxu0 0
        %337 = vmatpush2.bf16.msra.mxu0 0
        %338 = vmatprep.subr.bf16.mxu0 0
        %339 = vmatpush2.bf16.msra.mxu0 0
        %340 = vmatprep.mubr.bf16.mxu0 0
        %341 = vmatmul.mubr.bf16.gmra.mxu0 %v306
        %v342 = vpop.f32.mrf.mxu0
        %v343 = vadd.f32 %v291, %v342
        %v344 = vpop.f32.mrf.mxu0
        %v345 = vpop.f32.mrf.mxu0
        %v346 = vpop.f32.mrf.mxu0
        %347 = vdwg.mxu0
        %v348 = vpack.c.bf16 %v343, %v343
        %350 = vrot.lane.b32.xlu0 %v348, 96
        %v351 = vpop.permute.xlu0 %350
        %vm352 = vcmask 64512
        %v354 = vsel %vm352, %v348, 0
        %v357 = vsel %vm352, %v351, 0
        %359 = vmatprep.subr.bf16.mxu0 0
        %360 = vmatpush1.bf16.xpose.msra.mxu0 0
        %361 = vmatprep.subr.bf16.mxu0 0
        %362 = vmatpush1.bf16.xpose.msra.mxu0 0
        %363 = vmatprep.subr.bf16.mxu0 0
        %364 = vmatpush1.bf16.xpose.msra.mxu0 0
        %365 = vmatprep.subr.bf16.mxu0 0
        %366 = vmatpush1.bf16.xpose.msra.mxu0 0
        %367 = vmatprep.subr.bf16.mxu0 0
        %368 = vmatpush1.bf16.xpose.msra.mxu0 0
        %369 = vmatprep.subr.bf16.mxu0 0
        %370 = vmatpush1.bf16.xpose.msra.mxu0 0
        %371 = vmatprep.subr.bf16.mxu0 0
        %372 = vmatpush1.bf16.xpose.msra.mxu0 0
        %373 = vmatprep.subr.bf16.mxu0 0
        %374 = vmatpush1.bf16.xpose.msra.mxu0 %v357
        %375 = vmatprep.subr.bf16.mxu0 0
        %376 = vmatpush2.bf16.xpose.msra.mxu0 0
        %377 = vmatprep.subr.bf16.mxu0 0
        %378 = vmatpush2.bf16.xpose.msra.mxu0 0
        %379 = vmatprep.subr.bf16.mxu0 0
        %380 = vmatpush2.bf16.xpose.msra.mxu0 0
        %381 = vmatprep.subr.bf16.mxu0 0
        %382 = vmatpush2.bf16.xpose.msra.mxu0 0
        %383 = vmatprep.subr.bf16.mxu0 0
        %384 = vmatpush2.bf16.xpose.msra.mxu0 0
        %385 = vmatprep.subr.bf16.mxu0 0
        %386 = vmatpush2.bf16.xpose.msra.mxu0 0
        %387 = vmatprep.subr.bf16.mxu0 0
        %388 = vmatpush2.bf16.xpose.msra.mxu0 0
        %389 = vmatprep.subr.bf16.mxu0 0
        %390 = vmatpush2.bf16.xpose.msra.mxu0 0
        %391 = vmatprep.mubr.bf16.mxu0 0
        %392 = vmatmul.mubr.bf16.gmra.mxu0 %v354
        %v393 = vpop.f32.mrf.mxu0
        %v394 = vadd.f32 0.0, %v393
        %v395 = vpop.f32.mrf.mxu0
        %v396 = vpop.f32.mrf.mxu0
        %v397 = vpop.f32.mrf.mxu0
        %398 = vdwg.mxu0
        %v399 = vsel %vm270, -1e+09, %v394
        %v400 = vsel %vm352, %v399, -inf
        %401 = vmax.xlane.f32.xlu0 %v400
        %v402 = vpop.xlane.xlu0 %401
        %v403 = vsub.f32 %v399, %v402
        %v404 = vmul.f32 %v403, 1.442695
        %v405 = vpow.pop %v404
        %v406 = vsel %vm352, %v405, 0.0
        %407 = vadd.xlane.f32.xlu0 %v406
        %v408 = vpop.xlane.xlu0 %407
        %v409 = vrcp.pop %v408
        %v410 = vmul.f32 %v405, %v409
        %v411 = vpack.c.bf16 %v410, %v410
        %412 = vrot.lane.b32.xlu0 %v348, 64
        %v413 = vpop.permute.xlu0 %412
        %v415 = vsel %vm352, %v411, 0
        %vm417 = vcmask 1043456
        %v419 = vsel %vm417, %v413, 0
        %421 = vmatprep.subr.bf16.mxu0 0
        %422 = vmatpush1.bf16.msra.mxu0 0
        %423 = vmatprep.subr.bf16.mxu0 0
        %424 = vmatpush1.bf16.msra.mxu0 0
        %425 = vmatprep.subr.bf16.mxu0 0
        %426 = vmatpush1.bf16.msra.mxu0 0
        %427 = vmatprep.subr.bf16.mxu0 0
        %428 = vmatpush1.bf16.msra.mxu0 0
        %429 = vmatprep.subr.bf16.mxu0 0
        %430 = vmatpush1.bf16.msra.mxu0 0
        %431 = vmatprep.subr.bf16.mxu0 0
        %432 = vmatpush1.bf16.msra.mxu0 0
        %433 = vmatprep.subr.bf16.mxu0 0
        %434 = vmatpush1.bf16.msra.mxu0 0
        %435 = vmatprep.subr.bf16.mxu0 0
        %436 = vmatpush1.bf16.msra.mxu0 %v419
        %437 = vmatprep.subr.bf16.mxu0 0
        %438 = vmatpush2.bf16.msra.mxu0 0
        %439 = vmatprep.subr.bf16.mxu0 0
        %440 = vmatpush2.bf16.msra.mxu0 0
        %441 = vmatprep.subr.bf16.mxu0 0
        %442 = vmatpush2.bf16.msra.mxu0 0
        %443 = vmatprep.subr.bf16.mxu0 0
        %444 = vmatpush2.bf16.msra.mxu0 0
        %445 = vmatprep.subr.bf16.mxu0 0
        %446 = vmatpush2.bf16.msra.mxu0 0
        %447 = vmatprep.subr.bf16.mxu0 0
        %448 = vmatpush2.bf16.msra.mxu0 0
        %449 = vmatprep.subr.bf16.mxu0 0
        %450 = vmatpush2.bf16.msra.mxu0 0
        %451 = vmatprep.subr.bf16.mxu0 0
        %452 = vmatpush2.bf16.msra.mxu0 0
        %453 = vmatprep.mubr.bf16.mxu0 0
        %454 = vmatmul.mubr.bf16.gmra.mxu0 %v415
        %v455 = vpop.f32.mrf.mxu0
        %v456 = vadd.f32 0.0, %v455
        %v457 = vpop.f32.mrf.mxu0
        %v458 = vpop.f32.mrf.mxu0
        %v459 = vpop.f32.mrf.mxu0
        %460 = vdwg.mxu0
        %461 = vrot.lane.b32.xlu0 %v348, 120
        %v462 = vpop.permute.xlu0 %461
        %463 = vrot.lane.b32.xlu0 %v348, 88
        %v464 = vpop.permute.xlu0 %463
        %v466 = vsel %vm352, %v462, 0
        %v469 = vsel %vm352, %v464, 0
        %471 = vmatprep.subr.bf16.mxu0 0
        %472 = vmatpush1.bf16.xpose.msra.mxu0 0
        %473 = vmatprep.subr.bf16.mxu0 0
        %474 = vmatpush1.bf16.xpose.msra.mxu0 0
        %475 = vmatprep.subr.bf16.mxu0 0
        %476 = vmatpush1.bf16.xpose.msra.mxu0 0
        %477 = vmatprep.subr.bf16.mxu0 0
        %478 = vmatpush1.bf16.xpose.msra.mxu0 0
        %479 = vmatprep.subr.bf16.mxu0 0
        %480 = vmatpush1.bf16.xpose.msra.mxu0 0
        %481 = vmatprep.subr.bf16.mxu0 0
        %482 = vmatpush1.bf16.xpose.msra.mxu0 0
        %483 = vmatprep.subr.bf16.mxu0 0
        %484 = vmatpush1.bf16.xpose.msra.mxu0 0
        %485 = vmatprep.subr.bf16.mxu0 0
        %486 = vmatpush1.bf16.xpose.msra.mxu0 %v469
        %487 = vmatprep.subr.bf16.mxu0 0
        %488 = vmatpush2.bf16.xpose.msra.mxu0 0
        %489 = vmatprep.subr.bf16.mxu0 0
        %490 = vmatpush2.bf16.xpose.msra.mxu0 0
        %491 = vmatprep.subr.bf16.mxu0 0
        %492 = vmatpush2.bf16.xpose.msra.mxu0 0
        %493 = vmatprep.subr.bf16.mxu0 0
        %494 = vmatpush2.bf16.xpose.msra.mxu0 0
        %495 = vmatprep.subr.bf16.mxu0 0
        %496 = vmatpush2.bf16.xpose.msra.mxu0 0
        %497 = vmatprep.subr.bf16.mxu0 0
        %498 = vmatpush2.bf16.xpose.msra.mxu0 0
        %499 = vmatprep.subr.bf16.mxu0 0
        %500 = vmatpush2.bf16.xpose.msra.mxu0 0
        %501 = vmatprep.subr.bf16.mxu0 0
        %502 = vmatpush2.bf16.xpose.msra.mxu0 0
        %503 = vmatprep.mubr.bf16.mxu0 0
        %504 = vmatmul.mubr.bf16.gmra.mxu0 %v466
        %v505 = vpop.f32.mrf.mxu0
        %v506 = vadd.f32 0.0, %v505
        %v507 = vpop.f32.mrf.mxu0
        %v508 = vpop.f32.mrf.mxu0
        %v509 = vpop.f32.mrf.mxu0
        %510 = vdwg.mxu0
        %v511 = vsel %vm270, -1e+09, %v506
        %v512 = vsel %vm352, %v511, -inf
        %513 = vmax.xlane.f32.xlu0 %v512
        %v514 = vpop.xlane.xlu0 %513
        %v515 = vsub.f32 %v511, %v514
        %v516 = vmul.f32 %v515, 1.442695
        %v517 = vpow.pop %v516
        %v518 = vsel %vm352, %v517, 0.0
        %519 = vadd.xlane.f32.xlu0 %v518
        %v520 = vpop.xlane.xlu0 %519
        %v521 = vrcp.pop %v520
        %v522 = vmul.f32 %v517, %v521
        %v523 = vpack.c.bf16 %v522, %v522
        %524 = vrot.lane.b32.xlu0 %v348, 56
        %v525 = vpop.permute.xlu0 %524
        %v527 = vsel %vm352, %v523, 0
        %v530 = vsel %vm417, %v525, 0
        %532 = vmatprep.subr.bf16.mxu0 0
        %533 = vmatpush1.bf16.msra.mxu0 0
        %534 = vmatprep.subr.bf16.mxu0 0
        %535 = vmatpush1.bf16.msra.mxu0 0
        %536 = vmatprep.subr.bf16.mxu0 0
        %537 = vmatpush1.bf16.msra.mxu0 0
        %538 = vmatprep.subr.bf16.mxu0 0
        %539 = vmatpush1.bf16.msra.mxu0 0
        %540 = vmatprep.subr.bf16.mxu0 0
        %541 = vmatpush1.bf16.msra.mxu0 0
        %542 = vmatprep.subr.bf16.mxu0 0
        %543 = vmatpush1.bf16.msra.mxu0 0
        %544 = vmatprep.subr.bf16.mxu0 0
        %545 = vmatpush1.bf16.msra.mxu0 0
        %546 = vmatprep.subr.bf16.mxu0 0
        %547 = vmatpush1.bf16.msra.mxu0 %v530
        %548 = vmatprep.subr.bf16.mxu0 0
        %549 = vmatpush2.bf16.msra.mxu0 0
        %550 = vmatprep.subr.bf16.mxu0 0
        %551 = vmatpush2.bf16.msra.mxu0 0
        %552 = vmatprep.subr.bf16.mxu0 0
        %553 = vmatpush2.bf16.msra.mxu0 0
        %554 = vmatprep.subr.bf16.mxu0 0
        %555 = vmatpush2.bf16.msra.mxu0 0
        %556 = vmatprep.subr.bf16.mxu0 0
        %557 = vmatpush2.bf16.msra.mxu0 0
        %558 = vmatprep.subr.bf16.mxu0 0
        %559 = vmatpush2.bf16.msra.mxu0 0
        %560 = vmatprep.subr.bf16.mxu0 0
        %561 = vmatpush2.bf16.msra.mxu0 0
        %562 = vmatprep.subr.bf16.mxu0 0
        %563 = vmatpush2.bf16.msra.mxu0 0
        %564 = vmatprep.mubr.bf16.mxu0 0
        %565 = vmatmul.mubr.bf16.gmra.mxu0 %v527
        %v566 = vpop.f32.mrf.mxu0
        %v567 = vadd.f32 0.0, %v566
        %v568 = vpop.f32.mrf.mxu0
        %v569 = vpop.f32.mrf.mxu0
        %v570 = vpop.f32.mrf.mxu0
        %571 = vdwg.mxu0
        %572 = vrot.lane.b32.xlu0 %v348, 112
        %v573 = vpop.permute.xlu0 %572
        %574 = vrot.lane.b32.xlu0 %v348, 80
        %v575 = vpop.permute.xlu0 %574
        %v577 = vsel %vm352, %v573, 0
        %v580 = vsel %vm352, %v575, 0
        %582 = vmatprep.subr.bf16.mxu0 0
        %583 = vmatpush1.bf16.xpose.msra.mxu0 0
        %584 = vmatprep.subr.bf16.mxu0 0
        %585 = vmatpush1.bf16.xpose.msra.mxu0 0
        %586 = vmatprep.subr.bf16.mxu0 0
        %587 = vmatpush1.bf16.xpose.msra.mxu0 0
        %588 = vmatprep.subr.bf16.mxu0 0
        %589 = vmatpush1.bf16.xpose.msra.mxu0 0
        %590 = vmatprep.subr.bf16.mxu0 0
        %591 = vmatpush1.bf16.xpose.msra.mxu0 0
        %592 = vmatprep.subr.bf16.mxu0 0
        %593 = vmatpush1.bf16.xpose.msra.mxu0 0
        %594 = vmatprep.subr.bf16.mxu0 0
        %595 = vmatpush1.bf16.xpose.msra.mxu0 0
        %596 = vmatprep.subr.bf16.mxu0 0
        %597 = vmatpush1.bf16.xpose.msra.mxu0 %v580
        %598 = vmatprep.subr.bf16.mxu0 0
        %599 = vmatpush2.bf16.xpose.msra.mxu0 0
        %600 = vmatprep.subr.bf16.mxu0 0
        %601 = vmatpush2.bf16.xpose.msra.mxu0 0
        %602 = vmatprep.subr.bf16.mxu0 0
        %603 = vmatpush2.bf16.xpose.msra.mxu0 0
        %604 = vmatprep.subr.bf16.mxu0 0
        %605 = vmatpush2.bf16.xpose.msra.mxu0 0
        %606 = vmatprep.subr.bf16.mxu0 0
        %607 = vmatpush2.bf16.xpose.msra.mxu0 0
        %608 = vmatprep.subr.bf16.mxu0 0
        %609 = vmatpush2.bf16.xpose.msra.mxu0 0
        %610 = vmatprep.subr.bf16.mxu0 0
        %611 = vmatpush2.bf16.xpose.msra.mxu0 0
        %612 = vmatprep.subr.bf16.mxu0 0
        %613 = vmatpush2.bf16.xpose.msra.mxu0 0
        %614 = vmatprep.mubr.bf16.mxu0 0
        %615 = vmatmul.mubr.bf16.gmra.mxu0 %v577
        %v616 = vpop.f32.mrf.mxu0
        %v617 = vadd.f32 0.0, %v616
        %v618 = vpop.f32.mrf.mxu0
        %v619 = vpop.f32.mrf.mxu0
        %v620 = vpop.f32.mrf.mxu0
        %621 = vdwg.mxu0
        %v622 = vsel %vm270, -1e+09, %v617
        %v623 = vsel %vm352, %v622, -inf
        %624 = vmax.xlane.f32.xlu0 %v623
        %v625 = vpop.xlane.xlu0 %624
        %v626 = vsub.f32 %v622, %v625
        %v627 = vmul.f32 %v626, 1.442695
        %v628 = vpow.pop %v627
        %v629 = vsel %vm352, %v628, 0.0
        %630 = vadd.xlane.f32.xlu0 %v629
        %v631 = vpop.xlane.xlu0 %630
        %v632 = vrcp.pop %v631
        %v633 = vmul.f32 %v628, %v632
        %v634 = vpack.c.bf16 %v633, %v633
        %635 = vrot.lane.b32.xlu0 %v348, 48
        %v636 = vpop.permute.xlu0 %635
        %v638 = vsel %vm352, %v634, 0
        %v641 = vsel %vm417, %v636, 0
        %643 = vmatprep.subr.bf16.mxu0 0
        %644 = vmatpush1.bf16.msra.mxu0 0
        %645 = vmatprep.subr.bf16.mxu0 0
        %646 = vmatpush1.bf16.msra.mxu0 0
        %647 = vmatprep.subr.bf16.mxu0 0
        %648 = vmatpush1.bf16.msra.mxu0 0
        %649 = vmatprep.subr.bf16.mxu0 0
        %650 = vmatpush1.bf16.msra.mxu0 0
        %651 = vmatprep.subr.bf16.mxu0 0
        %652 = vmatpush1.bf16.msra.mxu0 0
        %653 = vmatprep.subr.bf16.mxu0 0
        %654 = vmatpush1.bf16.msra.mxu0 0
        %655 = vmatprep.subr.bf16.mxu0 0
        %656 = vmatpush1.bf16.msra.mxu0 0
        %657 = vmatprep.subr.bf16.mxu0 0
        %658 = vmatpush1.bf16.msra.mxu0 %v641
        %659 = vmatprep.subr.bf16.mxu0 0
        %660 = vmatpush2.bf16.msra.mxu0 0
        %661 = vmatprep.subr.bf16.mxu0 0
        %662 = vmatpush2.bf16.msra.mxu0 0
        %663 = vmatprep.subr.bf16.mxu0 0
        %664 = vmatpush2.bf16.msra.mxu0 0
        %665 = vmatprep.subr.bf16.mxu0 0
        %666 = vmatpush2.bf16.msra.mxu0 0
        %667 = vmatprep.subr.bf16.mxu0 0
        %668 = vmatpush2.bf16.msra.mxu0 0
        %669 = vmatprep.subr.bf16.mxu0 0
        %670 = vmatpush2.bf16.msra.mxu0 0
        %671 = vmatprep.subr.bf16.mxu0 0
        %672 = vmatpush2.bf16.msra.mxu0 0
        %673 = vmatprep.subr.bf16.mxu0 0
        %674 = vmatpush2.bf16.msra.mxu0 0
        %675 = vmatprep.mubr.bf16.mxu0 0
        %676 = vmatmul.mubr.bf16.gmra.mxu0 %v638
        %v677 = vpop.f32.mrf.mxu0
        %v678 = vadd.f32 0.0, %v677
        %v679 = vpop.f32.mrf.mxu0
        %v680 = vpop.f32.mrf.mxu0
        %v681 = vpop.f32.mrf.mxu0
        %682 = vdwg.mxu0
        %683 = vrot.lane.b32.xlu0 %v348, 104
        %v684 = vpop.permute.xlu0 %683
        %685 = vrot.lane.b32.xlu0 %v348, 72
        %v686 = vpop.permute.xlu0 %685
        %v688 = vsel %vm352, %v684, 0
        %v691 = vsel %vm352, %v686, 0
        %693 = vmatprep.subr.bf16.mxu0 0
        %694 = vmatpush1.bf16.xpose.msra.mxu0 0
        %695 = vmatprep.subr.bf16.mxu0 0
        %696 = vmatpush1.bf16.xpose.msra.mxu0 0
        %697 = vmatprep.subr.bf16.mxu0 0
        %698 = vmatpush1.bf16.xpose.msra.mxu0 0
        %699 = vmatprep.subr.bf16.mxu0 0
        %700 = vmatpush1.bf16.xpose.msra.mxu0 0
        %701 = vmatprep.subr.bf16.mxu0 0
        %702 = vmatpush1.bf16.xpose.msra.mxu0 0
        %703 = vmatprep.subr.bf16.mxu0 0
        %704 = vmatpush1.bf16.xpose.msra.mxu0 0
        %705 = vmatprep.subr.bf16.mxu0 0
        %706 = vmatpush1.bf16.xpose.msra.mxu0 0
        %707 = vmatprep.subr.bf16.mxu0 0
        %708 = vmatpush1.bf16.xpose.msra.mxu0 %v691
        %709 = vmatprep.subr.bf16.mxu0 0
        %710 = vmatpush2.bf16.xpose.msra.mxu0 0
        %711 = vmatprep.subr.bf16.mxu0 0
        %712 = vmatpush2.bf16.xpose.msra.mxu0 0
        %713 = vmatprep.subr.bf16.mxu0 0
        %714 = vmatpush2.bf16.xpose.msra.mxu0 0
        %715 = vmatprep.subr.bf16.mxu0 0
        %716 = vmatpush2.bf16.xpose.msra.mxu0 0
        %717 = vmatprep.subr.bf16.mxu0 0
        %718 = vmatpush2.bf16.xpose.msra.mxu0 0
        %719 = vmatprep.subr.bf16.mxu0 0
        %720 = vmatpush2.bf16.xpose.msra.mxu0 0
        %721 = vmatprep.subr.bf16.mxu0 0
        %722 = vmatpush2.bf16.xpose.msra.mxu0 0
        %723 = vmatprep.subr.bf16.mxu0 0
        %724 = vmatpush2.bf16.xpose.msra.mxu0 0
        %725 = vmatprep.mubr.bf16.mxu0 0
        %726 = vmatmul.mubr.bf16.gmra.mxu0 %v688
        %v727 = vpop.f32.mrf.mxu0
        %v728 = vadd.f32 0.0, %v727
        %v729 = vpop.f32.mrf.mxu0
        %v730 = vpop.f32.mrf.mxu0
        %v731 = vpop.f32.mrf.mxu0
        %732 = vdwg.mxu0
        %v733 = vsel %vm270, -1e+09, %v728
        %v734 = vsel %vm352, %v733, -inf
        %735 = vmax.xlane.f32.xlu0 %v734
        %v736 = vpop.xlane.xlu0 %735
        %v737 = vsub.f32 %v733, %v736
        %v738 = vmul.f32 %v737, 1.442695
        %v739 = vpow.pop %v738
        %v740 = vsel %vm352, %v739, 0.0
        %741 = vadd.xlane.f32.xlu0 %v740
        %v742 = vpop.xlane.xlu0 %741
        %v743 = vrcp.pop %v742
        %v744 = vmul.f32 %v739, %v743
        %v745 = vpack.c.bf16 %v744, %v744
        %746 = vrot.lane.b32.xlu0 %v348, 40
        %v747 = vpop.permute.xlu0 %746
        %v749 = vsel %vm352, %v745, 0
        %v752 = vsel %vm417, %v747, 0
        %754 = vmatprep.subr.bf16.mxu0 0
        %755 = vmatpush1.bf16.msra.mxu0 0
        %756 = vmatprep.subr.bf16.mxu0 0
        %757 = vmatpush1.bf16.msra.mxu0 0
        %758 = vmatprep.subr.bf16.mxu0 0
        %759 = vmatpush1.bf16.msra.mxu0 0
        %760 = vmatprep.subr.bf16.mxu0 0
        %761 = vmatpush1.bf16.msra.mxu0 0
        %762 = vmatprep.subr.bf16.mxu0 0
        %763 = vmatpush1.bf16.msra.mxu0 0
        %764 = vmatprep.subr.bf16.mxu0 0
        %765 = vmatpush1.bf16.msra.mxu0 0
        %766 = vmatprep.subr.bf16.mxu0 0
        %767 = vmatpush1.bf16.msra.mxu0 0
        %768 = vmatprep.subr.bf16.mxu0 0
        %769 = vmatpush1.bf16.msra.mxu0 %v752
        %770 = vmatprep.subr.bf16.mxu0 0
        %771 = vmatpush2.bf16.msra.mxu0 0
        %772 = vmatprep.subr.bf16.mxu0 0
        %773 = vmatpush2.bf16.msra.mxu0 0
        %774 = vmatprep.subr.bf16.mxu0 0
        %775 = vmatpush2.bf16.msra.mxu0 0
        %776 = vmatprep.subr.bf16.mxu0 0
        %777 = vmatpush2.bf16.msra.mxu0 0
        %778 = vmatprep.subr.bf16.mxu0 0
        %779 = vmatpush2.bf16.msra.mxu0 0
        %780 = vmatprep.subr.bf16.mxu0 0
        %781 = vmatpush2.bf16.msra.mxu0 0
        %782 = vmatprep.subr.bf16.mxu0 0
        %783 = vmatpush2.bf16.msra.mxu0 0
        %784 = vmatprep.subr.bf16.mxu0 0
        %785 = vmatpush2.bf16.msra.mxu0 0
        %786 = vmatprep.mubr.bf16.mxu0 0
        %787 = vmatmul.mubr.bf16.gmra.mxu0 %v749
        %v788 = vpop.f32.mrf.mxu0
        %v789 = vadd.f32 0.0, %v788
        %v790 = vpop.f32.mrf.mxu0
        %v791 = vpop.f32.mrf.mxu0
        %v792 = vpop.f32.mrf.mxu0
        %793 = vdwg.mxu0
        %795 = vrot.lane.b32.xlu0 %v567, 8
        %v796 = vpop.permute.xlu0 %795
        %799 = vrot.lane.b32.xlu0 %v678, 16
        %v800 = vpop.permute.xlu0 %799
        %803 = vrot.lane.b32.xlu0 %v789, 24
        %v804 = vpop.permute.xlu0 %803
        %v806 = vsel %vm352, %v456, %v796
        %vm807 = vcmask 130048
        %v808 = vsel %vm807, %v806, %v800
        %vm809 = vcmask 195584
        %v810 = vsel %vm809, %v808, %v804
        %v811 = vpack.c.bf16 %v810, %v810
        %v812 = vlaneseq
        %v813 = vshrl.u32 %v812, 7
        %v814 = vsub.s32 0, %v813
        %v815 = vrot.slane %v272, %v814
        %816 = vrot.lane.b32.xlu0 %v300, 32
        %v817 = vpop.permute.xlu0 %816
        %818 = vrot.lane.b32.xlu0 %v301, 32
        %v819 = vpop.permute.xlu0 %818
        %v823 = vsel %vm304, %v811, 0
        %825 = vmatprep.subr.bf16.mxu0 0
        %826 = vmatpush1.bf16.msra.mxu0 0
        %827 = vmatprep.subr.bf16.mxu0 0
        %828 = vmatpush1.bf16.msra.mxu0 0
        %829 = vmatprep.subr.bf16.mxu0 0
        %830 = vmatpush1.bf16.msra.mxu0 0
        %831 = vmatprep.subr.bf16.mxu0 0
        %832 = vmatpush1.bf16.msra.mxu0 0
        %833 = vmatprep.subr.bf16.mxu0 0
        %834 = vmatpush1.bf16.msra.mxu0 0
        %835 = vmatprep.subr.bf16.mxu0 0
        %836 = vmatpush1.bf16.msra.mxu0 0
        %837 = vmatprep.subr.bf16.mxu0 0
        %838 = vmatpush1.bf16.msra.mxu0 %v819
        %839 = vmatprep.subr.bf16.mxu0 0
        %840 = vmatpush1.bf16.msra.mxu0 %v817
        %841 = vmatprep.subr.bf16.mxu0 0
        %842 = vmatpush2.bf16.msra.mxu0 0
        %843 = vmatprep.subr.bf16.mxu0 0
        %844 = vmatpush2.bf16.msra.mxu0 0
        %845 = vmatprep.subr.bf16.mxu0 0
        %846 = vmatpush2.bf16.msra.mxu0 0
        %847 = vmatprep.subr.bf16.mxu0 0
        %848 = vmatpush2.bf16.msra.mxu0 0
        %849 = vmatprep.subr.bf16.mxu0 0
        %850 = vmatpush2.bf16.msra.mxu0 0
        %851 = vmatprep.subr.bf16.mxu0 0
        %852 = vmatpush2.bf16.msra.mxu0 0
        %853 = vmatprep.subr.bf16.mxu0 0
        %854 = vmatpush2.bf16.msra.mxu0 0
        %855 = vmatprep.subr.bf16.mxu0 0
        %856 = vmatpush2.bf16.msra.mxu0 0
        %857 = vmatprep.mubr.bf16.mxu0 0
        %858 = vmatmul.mubr.bf16.gmra.mxu0 %v823
        %v859 = vpop.f32.mrf.mxu0
        %v860 = vadd.f32 %v815, %v859
        %v861 = vpop.f32.mrf.mxu0
        %v862 = vpop.f32.mrf.mxu0
        %v863 = vpop.f32.mrf.mxu0
        %864 = vdwg.mxu0
        %v865 = vadd.f32 %v268, %v860
        %v866 = vsel %vm304, %v865, 0.0
        %867 = vadd.xlane.f32.xlu0 %v866
        %v868 = vpop.xlane.xlu0 %867
        %v869 = vrcp.pop 32.0
        %v870 = vmul.f32 %v868, %v869
        %v871 = vsub.f32 %v865, %v870
        %v872 = vmul.f32 %v871, %v871
        %v873 = vsel %vm304, %v872, 0.0
        %874 = vadd.xlane.f32.xlu0 %v873
        %v875 = vpop.xlane.xlu0 %874
        %v876 = vmul.f32 %v875, %v869
        %v877 = vadd.f32 %v876, 1e-05
        %v878 = vrsqrt.pop %v877
        %v879 = vmul.f32 %v871, %v878
        %v880 = vlaneseq
        %v881 = vshrl.u32 %v880, 7
        %v882 = vsub.s32 0, %v881
        %v883 = vrot.slane %v275, %v882
        %v884 = vmul.f32 %v879, %v883
        %v885 = vlaneseq
        %v886 = vshrl.u32 %v885, 7
        %v887 = vsub.s32 0, %v886
        %v888 = vrot.slane %v276, %v887
        %v889 = vadd.f32 %v884, %v888
        %v890 = vpack.c.bf16 %v889, %v889
        %v891 = vlaneseq
        %v892 = vshrl.u32 %v891, 7
        %v893 = vsub.s32 0, %v892
        %v894 = vrot.slane %v273, %v893
        %v899 = vunpack.c.l.b16 %v283
        %v900 = vunpack.c.l.b16 %v284
        %v901 = vunpack.c.l.b16 %v285
        %v902 = vunpack.c.l.b16 %v286
        %v903 = vpack.c.b16 %v900, %v899
        %v904 = vpack.c.b16 %v902, %v901
        %v908 = vsel %vm304, %v890, 0
        %910 = vmatprep.subr.bf16.mxu0 0
        %911 = vmatpush1.bf16.msra.mxu0 0
        %912 = vmatprep.subr.bf16.mxu0 0
        %913 = vmatpush1.bf16.msra.mxu0 0
        %914 = vmatprep.subr.bf16.mxu0 0
        %915 = vmatpush1.bf16.msra.mxu0 0
        %916 = vmatprep.subr.bf16.mxu0 0
        %917 = vmatpush1.bf16.msra.mxu0 0
        %918 = vmatprep.subr.bf16.mxu0 0
        %919 = vmatpush1.bf16.msra.mxu0 0
        %920 = vmatprep.subr.bf16.mxu0 0
        %921 = vmatpush1.bf16.msra.mxu0 0
        %922 = vmatprep.subr.bf16.mxu0 0
        %923 = vmatpush1.bf16.msra.mxu0 %v904
        %924 = vmatprep.subr.bf16.mxu0 0
        %925 = vmatpush1.bf16.msra.mxu0 %v903
        %926 = vmatprep.subr.bf16.mxu0 0
        %927 = vmatpush2.bf16.msra.mxu0 0
        %928 = vmatprep.subr.bf16.mxu0 0
        %929 = vmatpush2.bf16.msra.mxu0 0
        %930 = vmatprep.subr.bf16.mxu0 0
        %931 = vmatpush2.bf16.msra.mxu0 0
        %932 = vmatprep.subr.bf16.mxu0 0
        %933 = vmatpush2.bf16.msra.mxu0 0
        %934 = vmatprep.subr.bf16.mxu0 0
        %935 = vmatpush2.bf16.msra.mxu0 0
        %936 = vmatprep.subr.bf16.mxu0 0
        %937 = vmatpush2.bf16.msra.mxu0 0
        %938 = vmatprep.subr.bf16.mxu0 0
        %939 = vmatpush2.bf16.msra.mxu0 0
        %940 = vmatprep.subr.bf16.mxu0 0
        %941 = vmatpush2.bf16.msra.mxu0 0
        %942 = vmatprep.mubr.bf16.mxu0 0
        %943 = vmatmul.mubr.bf16.gmra.mxu0 %v908
        %v944 = vpop.f32.mrf.mxu0
        %v945 = vadd.f32 %v894, %v944
        %v946 = vpop.f32.mrf.mxu0
        %v947 = vpop.f32.mrf.mxu0
        %v948 = vpop.f32.mrf.mxu0
        %949 = vdwg.mxu0
        %v950 = vmul.f32 %v945, 0.5
        %v951 = vmul.f32 %v945, 0.70710677
        %v952 = vand.u32 2147483647, %v951
        %v953 = vmul.f32 %v952, 0.3275911
        %v954 = vadd.f32 %v953, 1.0
        %v955 = vrcp.pop %v954
        %v956 = vmul.f32 1.0, %v955
        %v957 = vmul.f32 %v956, 1.0614054
        %v958 = vadd.f32 %v957, -1.4531521
        %v959 = vmul.f32 %v956, %v958
        %v960 = vadd.f32 %v959, 1.4214138
        %v961 = vmul.f32 %v956, %v960
        %v962 = vadd.f32 %v961, -0.28449672
        %v963 = vmul.f32 %v956, %v962
        %v964 = vadd.f32 %v963, 0.2548296
        %v965 = vmul.f32 %v956, %v964
        %v966 = vsub.f32 0.0, %v952
        %v967 = vmul.f32 %v966, %v952
        %v968 = vmul.f32 %v967, 1.442695
        %v969 = vpow.pop %v968
        %v970 = vmul.f32 %v965, %v969
        %v971 = vsub.f32 1.0, %v970
        %vm972 = vcmp.ge.f32.partialorder %v951, 0.0
        %v973 = vsub.f32 0.0, %v971
        %v974 = vsel %vm972, %v971, %v973
        %v975 = vadd.f32 %v974, 1.0
        %v976 = vmul.f32 %v950, %v975
        %v977 = vpack.c.bf16 %v976, %v976
        %v978 = vlaneseq
        %v979 = vshrl.u32 %v978, 7
        %v980 = vsub.s32 0, %v979
        %v981 = vrot.slane %v274, %v980
        %982 = vrot.lane.b32.xlu0 %v903, 64
        %v983 = vpop.permute.xlu0 %982
        %984 = vrot.lane.b32.xlu0 %v904, 64
        %v985 = vpop.permute.xlu0 %984
        %vm986 = vcmask 523264
        %v988 = vsel %vm986, %v977, 0
        %v991 = vsel %vm986, %v983, 0
        %v994 = vsel %vm986, %v985, 0
        %996 = vmatprep.subr.bf16.mxu0 0
        %997 = vmatpush1.bf16.xpose.msra.mxu0 0
        %998 = vmatprep.subr.bf16.mxu0 0
        %999 = vmatpush1.bf16.xpose.msra.mxu0 0
        %1000 = vmatprep.subr.bf16.mxu0 0
        %1001 = vmatpush1.bf16.xpose.msra.mxu0 0
        %1002 = vmatprep.subr.bf16.mxu0 0
        %1003 = vmatpush1.bf16.xpose.msra.mxu0 0
        %1004 = vmatprep.subr.bf16.mxu0 0
        %1005 = vmatpush1.bf16.xpose.msra.mxu0 0
        %1006 = vmatprep.subr.bf16.mxu0 0
        %1007 = vmatpush1.bf16.xpose.msra.mxu0 0
        %1008 = vmatprep.subr.bf16.mxu0 0
        %1009 = vmatpush1.bf16.xpose.msra.mxu0 %v994
        %1010 = vmatprep.subr.bf16.mxu0 0
        %1011 = vmatpush1.bf16.xpose.msra.mxu0 %v991
        %1012 = vmatprep.subr.bf16.mxu0 0
        %1013 = vmatpush2.bf16.xpose.msra.mxu0 0
        %1014 = vmatprep.subr.bf16.mxu0 0
        %1015 = vmatpush2.bf16.xpose.msra.mxu0 0
        %1016 = vmatprep.subr.bf16.mxu0 0
        %1017 = vmatpush2.bf16.xpose.msra.mxu0 0
        %1018 = vmatprep.subr.bf16.mxu0 0
        %1019 = vmatpush2.bf16.xpose.msra.mxu0 0
        %1020 = vmatprep.subr.bf16.mxu0 0
        %1021 = vmatpush2.bf16.xpose.msra.mxu0 0
        %1022 = vmatprep.subr.bf16.mxu0 0
        %1023 = vmatpush2.bf16.xpose.msra.mxu0 0
        %1024 = vmatprep.subr.bf16.mxu0 0
        %1025 = vmatpush2.bf16.xpose.msra.mxu0 0
        %1026 = vmatprep.subr.bf16.mxu0 0
        %1027 = vmatpush2.bf16.xpose.msra.mxu0 0
        %1028 = vmatprep.mubr.bf16.mxu0 0
        %1029 = vmatmul.mubr.bf16.gmra.mxu0 %v988
        %v1030 = vpop.f32.mrf.mxu0
        %v1031 = vadd.f32 %v981, %v1030
        %v1032 = vpop.f32.mrf.mxu0
        %v1033 = vpop.f32.mrf.mxu0
        %v1034 = vpop.f32.mrf.mxu0
        %1035 = vdwg.mxu0
        %v1036 = vadd.f32 %v889, %v1031
        %v1037 = vsel %vm304, %v1036, 0.0
        %1038 = vadd.xlane.f32.xlu0 %v1037
        %v1039 = vpop.xlane.xlu0 %1038
        %v1040 = vmul.f32 %v1039, %v869
        %v1041 = vsub.f32 %v1036, %v1040
        %v1042 = vmul.f32 %v1041, %v1041
        %v1043 = vsel %vm304, %v1042, 0.0
        %1044 = vadd.xlane.f32.xlu0 %v1043
        %v1045 = vpop.xlane.xlu0 %1044
        %v1046 = vmul.f32 %v1045, %v869
        %v1047 = vadd.f32 %v1046, 1e-05
        %v1048 = vrsqrt.pop %v1047
        %v1049 = vmul.f32 %v1041, %v1048
        %v1050 = vlaneseq
        %v1051 = vshrl.u32 %v1050, 7
        %v1052 = vsub.s32 0, %v1051
        %v1053 = vrot.slane %v277, %v1052
        %v1054 = vmul.f32 %v1049, %v1053
        %v1055 = vlaneseq
        %v1056 = vshrl.u32 %v1055, 7
        %v1057 = vsub.s32 0, %v1056
        %v1058 = vrot.slane %v278, %v1057
        %v1059 = vadd.f32 %v1054, %v1058
        %1060 = vst.msk [vmem:[%s258] sm:$0xff] %vm304, %v1059
        %s1061 = sand.u32 %s144, 1
        %s1062 = scalar_lea.sflag [#allocation4], %s1061
        %s1063 = sand.u32 %s144, 1
        %s1064 = smul.addr %s1063, 8
        %s1065 = scalar_lea.vmem [#allocation7], %s1064
        // Predicated region
        $region49: #{tpu_custom_call.1} parent=39 // pred_check
          %p1066 = pneg %p154
        $region50: #{tpu_custom_call.1} parent=39 // pred_check_branch
          %1068 = sbr.rel (%p1066) target = $region52
        $region51: #{tpu_custom_call.1} parent=39 // pred_region
          %s1070 = ssub.s32 128, 128
          %1071 = vsyncadd %s1062, %s1070
          %s1072 = smul.addr %s21, 128
          %s1073 = scalar_lea.hbm %s5, %s1072
          %s1075 = sshll.u32 %s1065, 4
          %s1076 = int_to_ptr.vmem [resolvable:$true] %s1075
          %1078 = dma.vmem_to_hbm [thread:$0]  %s1076, 128, %s1073, %s1062
        $region52: #{tpu_custom_call.1} parent=39 // pred_fallthru
          _
      $region40: #{tpu_custom_call.1} parent=5 // pred_fallthru
        _
      %p1079 = scmp.le.s32.totalorder 2, %s16
      // Predicated region
      $region53: #{tpu_custom_call.1} parent=5 // pred_check
        %p1080 = pneg %p1079
      $region54: #{tpu_custom_call.1} parent=5 // pred_check_branch
        %1082 = sbr.rel (%p1080) target = $region56
      $region55: #{tpu_custom_call.1} parent=5 // pred_region
        %s1083 = ssub.s32 %s16, 2
        // Predicated region
        $region57: #{tpu_custom_call.1} parent=55 // pred_check
          %p1084 = pneg %p160
        $region58: #{tpu_custom_call.1} parent=55 // pred_check_branch
          %1086 = sbr.rel (%p1084) target = $region60
        $region59: #{tpu_custom_call.1} parent=55 // pred_region
          %s1087 = sand.u32 %s145, 1
          %s1088 = scalar_lea.sflag [#allocation4], %s1087
          %s1089 = sand.u32 %s145, 1
          %s1090 = smul.addr %s1089, 8
          %s1091 = scalar_lea.vmem [#allocation7], %s1090
          %1092 = dma.done %s1088, 128
        $region60: #{tpu_custom_call.1} parent=55 // pred_fallthru
          _
      $region56: #{tpu_custom_call.1} parent=5 // pred_fallthru
        _
    $region6: #{tpu_custom_call.1} parent=1 // loop_footer
      %s20 = sadd.s32 1, %s16
    $region7: #{tpu_custom_call.1} parent=1 // loop_footer_branch
      %15 = sbr.rel target = $region3
    $region8: #{tpu_custom_call.1} parent=1 // loop_exit
      _
    %1093 = vsyncpa [#allocation3], 1
    %s1094 = scalar_lea.sflag [#allocation3], 1
    %1095 = vsyncpa %s1094, 1
    %1096 = vsyncpa [#allocation6], 1
    %1097 = vsyncpa [#allocation4], 1
    %s1098 = scalar_lea.sflag [#allocation4], 1
    %1099 = vsyncpa %s1098, 1

</llo_original>
